<compile_context>
chip_gen: v7x
topology: tpu7x:2x2x1
jax: 0.10.0
libtpu: 0.0.40
codegen_flags: <defaults>
</compile_context>

<pallas_src>
import jax
import jax.numpy as jnp
from jax.experimental import pallas as pl
from jax.experimental.pallas import tpu as pltpu

NEG_SLOPE = 0.2   # GATv2 default negative_slope
BN_EPS = 1e-5     # BatchNorm1d default eps
LANE = 128
SUBLANE = 8


def _round_up(x, m):
    return ((x + m - 1) // m) * m


def _pad_to(x, shape):
    return jnp.pad(x, [(0, s - d) for d, s in zip(x.shape, shape)])


# ----------------------------------------------------------------------------
# Pallas kernels
# ----------------------------------------------------------------------------
def _make_gatv2_kernel(td, ns, edge_dim, c_pad, fuse_bn):
    """Dense GATv2Conv (heads=1, edge_dim, add_self_loops=False) over one
    destination-node tile of TD rows, with optional fused ReLU+BN epilogue."""

    def kernel(*refs):
        if fuse_bn:
            (xs_ref, xd_ref, eattr_ref, adj_ref,
             wl_ref, bl_ref, wr_ref, br_ref, we_ref, att_ref, bias_ref,
             g_ref, be_ref, mu_ref, var_ref, out_ref) = refs
        else:
            (xs_ref, xd_ref, eattr_ref, adj_ref,
             wl_ref, bl_ref, wr_ref, br_ref, we_ref, att_ref, bias_ref,
             out_ref) = refs

        f32 = jnp.float32
        bf16 = jnp.bfloat16

        # Source / destination linear projections: single well-shaped MXU
        # matmuls, bf16 inputs, f32 accumulation.
        xl = jnp.dot(xs_ref[...].astype(bf16), wl_ref[...].astype(bf16),
                     preferred_element_type=f32) + bl_ref[...]        # [Ns, C]
        xr = jnp.dot(xd_ref[...].astype(bf16), wr_ref[...].astype(bf16),
                     preferred_element_type=f32) + br_ref[...]        # [TD, C]

        # Edge-attribute projection as ONE 2-D MXU matmul:
        # [TD*Ns, E] x [E, C] -> [TD*Ns, C]  (no per-row broadcast of we).
        e2d = eattr_ref[...].reshape(td * ns, edge_dim).astype(bf16)
        eproj = jnp.dot(e2d, we_ref[...].astype(bf16),
                        preferred_element_type=f32).reshape(td, ns, c_pad)

        # GATv2 attention logits: att . LeakyReLU(xl_j + xr_i + e_ij)
        z = xl[None, :, :] + xr[:, None, :] + eproj                   # [TD, Ns, C]
        z = jnp.where(z > 0, z, NEG_SLOPE * z)
        score = jnp.sum(z * att_ref[...][None, :, :], axis=-1)        # [TD, Ns]

        # Masked softmax over incoming edges of each destination row.
        # NOTE: correctness relies on adj masking only; off-edge eattr being
        # exactly zero is not required.
        adj = adj_ref[...]
        score = jnp.where(adj > 0, score, f32(-1e30))
        m = jnp.max(score, axis=-1, keepdims=True)
        e = jnp.exp(score - m) * adj
        denom = jnp.sum(e, axis=-1, keepdims=True)
        inv = pl.reciprocal(jnp.maximum(denom, f32(1e-16)), approx=True)
        alpha = e * inv                                               # [TD, Ns]

        # Weighted aggregation of source messages (x_j via lin_l) + output bias.
        out = jnp.dot(alpha.astype(bf16), xl.astype(bf16),
                      preferred_element_type=f32) + bias_ref[...]     # [TD, C]

        if fuse_bn:   # ReLU + BatchNorm1d (eval mode) fused epilogue.
            out = jnp.maximum(out, 0.0)
            out = ((out - mu_ref[...]) * jax.lax.rsqrt(var_ref[...] + BN_EPS)
                   * g_ref[...] + be_ref[...])
        out_ref[...] = out

    return kernel


def _pick_dst_tile(n_dst, ns_pad, c_pad):
    # Bound the f32 [TD, Ns, C] intermediates (z + eproj + slack) to ~8 MiB so
    # double-buffered tiles stay well under scoped VMEM on every generation
    # (v7x: 64 MiB physical / 32 MiB scoped default).
    budget = 8 * 1024 * 1024
    td = budget // max(1, ns_pad * c_pad * 4 * 3)
    td = min(max(td, SUBLANE), 256, _round_up(n_dst, SUBLANE))
    td = max(SUBLANE, (td // SUBLANE) * SUBLANE)
    return td


def gatv2_dense(x_src, x_dst, eattr, adj, p, bn=None):
    """One GATv2Conv relation.  Features/weights are lane-padded to 128; the
    padded channels are exactly zero and stay zero through the layer."""
    n_src = x_src.shape[0]
    n_dst = x_dst.shape[0]
    edge_dim = eattr.shape[-1]
    kl = p['wl'].shape[0]
    kr = p['wr'].shape[0]
    c_pad = p['wl'].shape[1]

    ns_pad = _round_up(n_src, SUBLANE)
    td = _pick_dst_tile(n_dst, ns_pad, c_pad)
    nd_pad = _round_up(n_dst, td)

    xs = _pad_to(x_src, (ns_pad, kl))
    xd = _pad_to(x_dst, (nd_pad, kr))
    ea = _pad_to(eattr, (nd_pad, ns_pad, edge_dim))
    ad = _pad_to(adj, (nd_pad, ns_pad))

    def full2(a):
        return pl.BlockSpec(a.shape, lambda i: (0, 0))

    in_specs = [
        pl.BlockSpec((ns_pad, kl), lambda i: (0, 0)),              # x_src (full)
        pl.BlockSpec((td, kr), lambda i: (i, 0)),                  # x_dst (tiled)
        pl.BlockSpec((td, ns_pad, edge_dim), lambda i: (i, 0, 0)),  # eattr (tiled)
        pl.BlockSpec((td, ns_pad), lambda i: (i, 0)),              # adj   (tiled)
        full2(p['wl']), full2(p['bl']), full2(p['wr']), full2(p['br']),
        full2(p['we']), full2(p['att']), full2(p['bias']),
    ]
    args = [xs, xd, ea, ad,
            p['wl'], p['bl'], p['wr'], p['br'], p['we'], p['att'], p['bias']]
    if bn is not None:
        for k in ('gamma', 'beta', 'mean', 'var'):
            in_specs.append(full2(bn[k]))
            args.append(bn[k])

    out = pl.pallas_call(
        _make_gatv2_kernel(td, ns_pad, edge_dim, c_pad, bn is not None),
        out_shape=jax.ShapeDtypeStruct((nd_pad, c_pad), jnp.float32),
        grid=(nd_pad // td,),
        in_specs=in_specs,
        out_specs=pl.BlockSpec((td, c_pad), lambda i: (i, 0)),
        compiler_params=pltpu.CompilerParams(
            dimension_semantics=("parallel",)),   # v7x: shard dst tiles over 2 TCs
    )(*args)
    return out[:n_dst]


def _relu_bn_kernel(x_ref, g_ref, b_ref, m_ref, v_ref, o_ref):
    x = jnp.maximum(x_ref[...], 0.0)
    o_ref[...] = ((x - m_ref[...]) * jax.lax.rsqrt(v_ref[...] + BN_EPS)
                  * g_ref[...] + b_ref[...])


def relu_bn(x, bn):
    """Standalone ReLU+BN(eval); only used when a node type aggregates >1
    relation (otherwise the epilogue is fused into the GATv2 kernel)."""
    n, c = x.shape
    td = min(_round_up(n, SUBLANE), 256)
    n_pad = _round_up(n, td)
    xp = _pad_to(x, (n_pad, c))
    out = pl.pallas_call(
        _relu_bn_kernel,
        out_shape=jax.ShapeDtypeStruct((n_pad, c), jnp.float32),
        grid=(n_pad // td,),
        in_specs=[pl.BlockSpec((td, c), lambda i: (i, 0)),
                  pl.BlockSpec(bn['gamma'].shape, lambda i: (0, 0)),
                  pl.BlockSpec(bn['beta'].shape, lambda i: (0, 0)),
                  pl.BlockSpec(bn['mean'].shape, lambda i: (0, 0)),
                  pl.BlockSpec(bn['var'].shape, lambda i: (0, 0))],
        out_specs=pl.BlockSpec((td, c), lambda i: (i, 0)),
        compiler_params=pltpu.CompilerParams(dimension_semantics=("parallel",)),
    )(xp, bn['gamma'], bn['beta'], bn['mean'], bn['var'])
    return out[:n]


# ----------------------------------------------------------------------------
# Model glue (HeteroConv / HGATBlock / HGAD forward), plain JAX
# ----------------------------------------------------------------------------
def hetero_conv(x_dict, graphs, layer_params, bns=None):
    # Count relations per destination type: if exactly one, the ReLU+BN
    # epilogue is fused into the GATv2 kernel (saves one pallas_call + one HBM
    # round trip per node type per layer).
    n_in = {}
    for (_, _, dst) in graphs:
        n_in[dst] = n_in.get(dst, 0) + 1

    agg = {}
    for et, g in graphs.items():
        src, _, dst = et
        bn = bns[dst] if (bns is not None and n_in[dst] == 1) else None
        out = gatv2_dense(x_dict[src], x_dict[dst], g['eattr'], g['adj'],
                          layer_params[et], bn=bn)
        agg.setdefault(dst, []).append(out)

    res = {}
    for k, v in agg.items():
        y = v[0] if len(v) == 1 else jnp.mean(jnp.stack(v, 0), 0)  # aggr="mean"
        if bns is not None and n_in[k] > 1:
            y = relu_bn(y, bns[k])
        res[k] = y
    return res


def hgat_block(x_dict, graphs, convs, bns):
    # Eval mode: dropout is a no-op; BN uses running stats.
    if len(convs) > 1:
        for layer_params, bn_dict in zip(convs[:-1], bns):
            x_dict = hetero_conv(x_dict, graphs, layer_params, bns=bn_dict)
    return hetero_conv(x_dict, graphs, convs[-1])


def hgad_forward(params, x_dict, graphs):
    # Lane-pad node features once at entry; padded channels stay exactly zero
    # through every layer (weights / biases / BN padded with identity values),
    # so the final slice is exact.
    xp = {nt: _pad_to(x, (x.shape[0], _round_up(x.shape[1], LANE)))
          for nt, x in x_dict.items()}
    enc_p = hgat_block(xp, graphs, params['enc_convs'], params['enc_bns'])
    dec_p = hgat_block(enc_p, graphs, params['dec_convs'], params['dec_bns'])
    enc = {k: v[:, :params['latent_dim']] for k, v in enc_p.items()}
    dec = {k: v[:, :params['out_sizes'][k]] for k, v in dec_p.items()}
    return enc, dec
    # TODO(synk): InnerProductDecoder / link BCE loss, negative sampling,
    # AdamW + StepLR and fit/predict loops are training-time machinery, not
    # part of forward().


# ----------------------------------------------------------------------------
# Deterministic parameter init (lane-padded to 128 channels)
# ----------------------------------------------------------------------------
class KeyGen:
    def __init__(self, seed=0):
        self._key = jax.random.PRNGKey(seed)

    def __call__(self):
        self._key, sub = jax.random.split(self._key)
        return sub


def init_gat_params(kg, in_src, in_dst, out_ch, edge_dim):
    s = 0.1
    c_pad = _round_up(out_ch, LANE)
    kl = _round_up(in_src, LANE)
    kr = _round_up(in_dst, LANE)
    wl = jnp.zeros((kl, c_pad), jnp.float32).at[:in_src, :out_ch].set(
        jax.random.normal(kg(), (in_src, out_ch), jnp.float32) * s)
    wr = jnp.zeros((kr, c_pad), jnp.float32).at[:in_dst, :out_ch].set(
        jax.random.normal(kg(), (in_dst, out_ch), jnp.float32) * s)
    we = jnp.zeros((edge_dim, c_pad), jnp.float32).at[:, :out_ch].set(
        jax.random.normal(kg(), (edge_dim, out_ch), jnp.float32) * s)
    att = jnp.zeros((1, c_pad), jnp.float32).at[:, :out_ch].set(
        jax.random.normal(kg(), (1, out_ch), jnp.float32) * s)
    return dict(
        wl=wl, bl=jnp.zeros((1, c_pad), jnp.float32),
        wr=wr, br=jnp.zeros((1, c_pad), jnp.float32),
        we=we, att=att,
        bias=jnp.zeros((1, c_pad), jnp.float32),
    )


def init_bn(out_ch):
    c_pad = _round_up(out_ch, LANE)
    # Padded channels use identity BN stats so zero stays zero.
    return dict(gamma=jnp.ones((1, c_pad), jnp.float32),
                beta=jnp.zeros((1, c_pad), jnp.float32),
                mean=jnp.zeros((1, c_pad), jnp.float32),
                var=jnp.ones((1, c_pad), jnp.float32))


def build_hgad_params(kg, node_types, edge_types, input_sizes, edge_sizes,
                      default_hidden):
    # Encoder HGATBlock
    cur = dict(input_sizes)
    enc_convs, enc_bns = [], []
    n_layers = len(default_hidden)
    for li, out_ch in enumerate(default_hidden):
        enc_convs.append({et: init_gat_params(kg, cur[et[0]], cur[et[2]],
                                              out_ch, edge_sizes[et[1]])
                          for et in edge_types})
        if li < n_layers - 1:
            enc_bns.append({nt: init_bn(out_ch) for nt in node_types})
        cur = {nt: out_ch for nt in node_types}

    # Feature-decoder HGATBlock: hidden = default_hidden[::-1][1:],
    # output_size = input_sizes.
    dec_hidden = default_hidden[::-1][1:]
    dec_convs, dec_bns = [], []
    for out_ch in dec_hidden:
        dec_convs.append({et: init_gat_params(kg, cur[et[0]], cur[et[2]],
                                              out_ch, edge_sizes[et[1]])
                          for et in edge_types})
        dec_bns.append({nt: init_bn(out_ch) for nt in node_types})
        cur = {nt: out_ch for nt in node_types}
    dec_convs.append({et: init_gat_params(kg, cur[et[0]], cur[et[2]],
                                          input_sizes[et[2]], edge_sizes[et[1]])
                      for et in edge_types})
    return dict(enc_convs=enc_convs, enc_bns=enc_bns,
                dec_convs=dec_convs, dec_bns=dec_bns,
                latent_dim=default_hidden[-1], out_sizes=dict(input_sizes))


# ----------------------------------------------------------------------------
# Demo
# ----------------------------------------------------------------------------
if __name__ == "__main__":
    node_types = ["claim", "party"]
    edge_types = [("claim", "c2p", "party"), ("party", "p2c", "claim")]
    input_sizes = {"claim": 12, "party": 10}
    edge_sizes = {"c2p": 4, "p2c": 4}
    default_hidden = [32, 16]
    num_nodes = {"claim": 16, "party": 16}

    kg = KeyGen(0)

    # Node features
    x_dict = {nt: jax.random.normal(kg(), (num_nodes[nt], input_sizes[nt]),
                                    jnp.float32)
              for nt in node_types}

    # Dense heterogeneous graph (every destination node has >=1 incoming edge).
    # TODO(synk): production-scale sparse graphs should use CSR neighbor lists
    # with scalar-prefetched gather instead of dense [Nd, Ns, E] edge attrs.
    graphs = {}
    for (src, rel, dst) in edge_types:
        ns, nd = num_nodes[src], num_nodes[dst]
        rows = jnp.arange(nd)[:, None]
        cols = jnp.arange(ns)[None, :]
        shift = 5 if rel == "c2p" else 3
        adj = ((cols == rows % ns) | (cols == (rows + shift) % ns)
               ).astype(jnp.float32)                                # [Nd, Ns]
        eattr = (jax.random.normal(kg(), (nd, ns, edge_sizes[rel]), jnp.float32)
                 * adj[:, :, None])                                 # [Nd, Ns, E]
        graphs[(src, rel, dst)] = dict(adj=adj, eattr=eattr)

    params = build_hgad_params(kg, node_types, edge_types, input_sizes,
                               edge_sizes, default_hidden)

    enc_out, dec_out = hgad_forward(params, x_dict, graphs)
    jax.block_until_ready((enc_out, dec_out))

    # Sanity: latent has last hidden size; reconstruction matches input sizes.
    assert enc_out["claim"].shape == (num_nodes["claim"], default_hidden[-1])
    assert enc_out["party"].shape == (num_nodes["party"], default_hidden[-1])
    assert dec_out["claim"].shape == (num_nodes["claim"], input_sizes["claim"])
    assert dec_out["party"].shape == (num_nodes["party"], input_sizes["party"])
    assert all(bool(jnp.all(jnp.isfinite(v))) for v in enc_out.values())
    assert all(bool(jnp.all(jnp.isfinite(v))) for v in dec_out.values())

    print("KERNEL_OK")
</pallas_src>

<mosaic_0001>
module attributes {stable_mosaic.version = 11 : i64} {
  func.func @kernel(%arg0: i32, %arg1: memref<16x128xf32, #tpu.memory_space<vmem>>, %arg2: memref<16x128xf32, #tpu.memory_space<vmem>>, %arg3: memref<16x16x4xf32, #tpu.memory_space<vmem>>, %arg4: memref<16x16xf32, #tpu.memory_space<vmem>>, %arg5: memref<128x128xf32, #tpu.memory_space<vmem>>, %arg6: memref<1x128xf32, #tpu.memory_space<vmem>>, %arg7: memref<128x128xf32, #tpu.memory_space<vmem>>, %arg8: memref<1x128xf32, #tpu.memory_space<vmem>>, %arg9: memref<4x128xf32, #tpu.memory_space<vmem>>, %arg10: memref<1x128xf32, #tpu.memory_space<vmem>>, %arg11: memref<1x128xf32, #tpu.memory_space<vmem>>, %arg12: memref<1x128xf32, #tpu.memory_space<vmem>>, %arg13: memref<1x128xf32, #tpu.memory_space<vmem>>, %arg14: memref<1x128xf32, #tpu.memory_space<vmem>>, %arg15: memref<1x128xf32, #tpu.memory_space<vmem>>, %arg16: memref<16x128xf32, #tpu.memory_space<vmem>>) attributes {dimension_semantics = [#tpu.dimension_semantics<parallel>], iteration_bounds = array<i64: 1>, scalar_prefetch = 0 : i64, scratch_operands = 0 : i64, tpu.core_type = #tpu.core_type<tc>, window_params = [{pipeline_mode = #tpu.pipeline_mode<synchronous>, transform_indices = @transform_0, window_bounds = array<i64: 16, 128>}, {transform_indices = @transform_1, window_bounds = array<i64: 16, 128>}, {transform_indices = @transform_2, window_bounds = array<i64: 16, 16, 4>}, {transform_indices = @transform_3, window_bounds = array<i64: 16, 16>}, {pipeline_mode = #tpu.pipeline_mode<synchronous>, transform_indices = @transform_4, window_bounds = array<i64: 128, 128>}, {pipeline_mode = #tpu.pipeline_mode<synchronous>, transform_indices = @transform_5, window_bounds = array<i64: 1, 128>}, {pipeline_mode = #tpu.pipeline_mode<synchronous>, transform_indices = @transform_6, window_bounds = array<i64: 128, 128>}, {pipeline_mode = #tpu.pipeline_mode<synchronous>, transform_indices = @transform_7, window_bounds = array<i64: 1, 128>}, {pipeline_mode = #tpu.pipeline_mode<synchronous>, transform_indices = @transform_8, window_bounds = array<i64: 4, 128>}, {pipeline_mode = #tpu.pipeline_mode<synchronous>, transform_indices = @transform_9, window_bounds = array<i64: 1, 128>}, {pipeline_mode = #tpu.pipeline_mode<synchronous>, transform_indices = @transform_10, window_bounds = array<i64: 1, 128>}, {pipeline_mode = #tpu.pipeline_mode<synchronous>, transform_indices = @transform_11, window_bounds = array<i64: 1, 128>}, {pipeline_mode = #tpu.pipeline_mode<synchronous>, transform_indices = @transform_12, window_bounds = array<i64: 1, 128>}, {pipeline_mode = #tpu.pipeline_mode<synchronous>, transform_indices = @transform_13, window_bounds = array<i64: 1, 128>}, {pipeline_mode = #tpu.pipeline_mode<synchronous>, transform_indices = @transform_14, window_bounds = array<i64: 1, 128>}, {transform_indices = @transform_15, window_bounds = array<i64: 16, 128>}]} {
    %c0 = arith.constant 0 : index
    %c0_0 = arith.constant 0 : index
    %0 = vector.load %arg1[%c0, %c0_0] : memref<16x128xf32, #tpu.memory_space<vmem>>, vector<16x128xf32>
    %1 = arith.truncf %0 : vector<16x128xf32> to vector<16x128xbf16>
    %c0_1 = arith.constant 0 : index
    %c0_2 = arith.constant 0 : index
    %2 = vector.load %arg5[%c0_1, %c0_2] : memref<128x128xf32, #tpu.memory_space<vmem>>, vector<128x128xf32>
    %3 = arith.truncf %2 : vector<128x128xf32> to vector<128x128xbf16>
    %cst = arith.constant dense<0.000000e+00> : vector<16x128xf32>
    %4 = tpu.matmul %1, %3, %cst {dimension_numbers = #tpu.dot_dimension_numbers<[1], [0], [0], [1], [0, 0, 1, 1], [], []>} : vector<16x128xbf16>, vector<128x128xbf16>, vector<16x128xf32> -> vector<16x128xf32>
    %c0_3 = arith.constant 0 : index
    %c0_4 = arith.constant 0 : index
    %5 = vector.load %arg6[%c0_3, %c0_4] : memref<1x128xf32, #tpu.memory_space<vmem>>, vector<1x128xf32>
    %6 = vector.broadcast %5 : vector<1x128xf32> to vector<16x128xf32>
    %7 = arith.addf %4, %6 : vector<16x128xf32>
    %c0_5 = arith.constant 0 : index
    %c0_6 = arith.constant 0 : index
    %8 = vector.load %arg2[%c0_5, %c0_6] : memref<16x128xf32, #tpu.memory_space<vmem>>, vector<16x128xf32>
    %9 = arith.truncf %8 : vector<16x128xf32> to vector<16x128xbf16>
    %c0_7 = arith.constant 0 : index
    %c0_8 = arith.constant 0 : index
    %10 = vector.load %arg7[%c0_7, %c0_8] : memref<128x128xf32, #tpu.memory_space<vmem>>, vector<128x128xf32>
    %11 = arith.truncf %10 : vector<128x128xf32> to vector<128x128xbf16>
    %cst_9 = arith.constant dense<0.000000e+00> : vector<16x128xf32>
    %12 = tpu.matmul %9, %11, %cst_9 {dimension_numbers = #tpu.dot_dimension_numbers<[1], [0], [0], [1], [0, 0, 1, 1], [], []>} : vector<16x128xbf16>, vector<128x128xbf16>, vector<16x128xf32> -> vector<16x128xf32>
    %c0_10 = arith.constant 0 : index
    %c0_11 = arith.constant 0 : index
    %13 = vector.load %arg8[%c0_10, %c0_11] : memref<1x128xf32, #tpu.memory_space<vmem>>, vector<1x128xf32>
    %14 = vector.broadcast %13 : vector<1x128xf32> to vector<16x128xf32>
    %15 = arith.addf %12, %14 : vector<16x128xf32>
    %c0_12 = arith.constant 0 : index
    %c0_13 = arith.constant 0 : index
    %c0_14 = arith.constant 0 : index
    %16 = vector.load %arg3[%c0_12, %c0_13, %c0_14] : memref<16x16x4xf32, #tpu.memory_space<vmem>>, vector<16x16x4xf32>
    %17 = vector.shape_cast %16 : vector<16x16x4xf32> to vector<256x4xf32>
    %18 = arith.truncf %17 : vector<256x4xf32> to vector<256x4xbf16>
    %c0_15 = arith.constant 0 : index
    %c0_16 = arith.constant 0 : index
    %19 = vector.load %arg9[%c0_15, %c0_16] : memref<4x128xf32, #tpu.memory_space<vmem>>, vector<4x128xf32>
    %20 = arith.truncf %19 : vector<4x128xf32> to vector<4x128xbf16>
    %cst_17 = arith.constant dense<0.000000e+00> : vector<256x128xf32>
    %21 = tpu.matmul %18, %20, %cst_17 {dimension_numbers = #tpu.dot_dimension_numbers<[1], [0], [0], [1], [0, 0, 1, 1], [], []>} : vector<256x4xbf16>, vector<4x128xbf16>, vector<256x128xf32> -> vector<256x128xf32>
    %22 = vector.shape_cast %21 : vector<256x128xf32> to vector<16x16x128xf32>
    %23 = vector.shape_cast %7 : vector<16x128xf32> to vector<1x16x128xf32>
    %24 = vector.shape_cast %15 : vector<16x128xf32> to vector<16x1x128xf32>
    %25 = vector.broadcast %23 : vector<1x16x128xf32> to vector<16x16x128xf32>
    %26 = vector.broadcast %24 : vector<16x1x128xf32> to vector<16x16x128xf32>
    %27 = arith.addf %25, %26 : vector<16x16x128xf32>
    %28 = arith.addf %27, %22 : vector<16x16x128xf32>
    %cst_18 = arith.constant 0.000000e+00 : f32
    %29 = vector.broadcast %cst_18 : f32 to vector<16x16x128xf32>
    %30 = arith.cmpf ogt, %28, %29 : vector<16x16x128xf32>
    %cst_19 = arith.constant 2.000000e-01 : f32
    %31 = vector.broadcast %cst_19 : f32 to vector<16x16x128xf32>
    %32 = arith.mulf %31, %28 : vector<16x16x128xf32>
    %33 = arith.select %30, %28, %32 : vector<16x16x128xi1>, vector<16x16x128xf32>
    %c0_20 = arith.constant 0 : index
    %c0_21 = arith.constant 0 : index
    %34 = vector.load %arg10[%c0_20, %c0_21] : memref<1x128xf32, #tpu.memory_space<vmem>>, vector<1x128xf32>
    %35 = vector.shape_cast %34 : vector<1x128xf32> to vector<1x1x128xf32>
    %36 = vector.broadcast %35 : vector<1x1x128xf32> to vector<16x16x128xf32>
    %37 = arith.mulf %33, %36 : vector<16x16x128xf32>
    %cst_22 = arith.constant dense<0.000000e+00> : vector<16x16xf32>
    %38 = vector.multi_reduction <add>, %37, %cst_22 [2] : vector<16x16x128xf32> to vector<16x16xf32>
    %c0_23 = arith.constant 0 : index
    %c0_24 = arith.constant 0 : index
    %39 = vector.load %arg4[%c0_23, %c0_24] : memref<16x16xf32, #tpu.memory_space<vmem>>, vector<16x16xf32>
    %cst_25 = arith.constant 0.000000e+00 : f32
    %40 = vector.broadcast %cst_25 : f32 to vector<16x16xf32>
    %41 = arith.cmpf ogt, %39, %40 : vector<16x16xf32>
    %cst_26 = arith.constant -1.000000e+30 : f32
    %42 = vector.broadcast %cst_26 : f32 to vector<16x16xf32>
    %43 = arith.select %41, %38, %42 : vector<16x16xi1>, vector<16x16xf32>
    %cst_27 = arith.constant dense<0xFF800000> : vector<16xf32>
    %44 = vector.multi_reduction <maximumf>, %43, %cst_27 [1] : vector<16x16xf32> to vector<16xf32>
    %45 = vector.shape_cast %44 : vector<16xf32> to vector<16x1xf32>
    %46 = vector.broadcast %45 : vector<16x1xf32> to vector<16x16xf32>
    %47 = arith.subf %43, %46 : vector<16x16xf32>
    %48 = math.exp %47 : vector<16x16xf32>
    %49 = arith.mulf %48, %39 : vector<16x16xf32>
    %cst_28 = arith.constant dense<0.000000e+00> : vector<16xf32>
    %50 = vector.multi_reduction <add>, %49, %cst_28 [1] : vector<16x16xf32> to vector<16xf32>
    %51 = vector.shape_cast %50 : vector<16xf32> to vector<16x1xf32>
    %cst_29 = arith.constant 1.000000e-16 : f32
    %52 = vector.broadcast %cst_29 : f32 to vector<16x1xf32>
    %53 = arith.maximumf %51, %52 : vector<16x1xf32>
    %54 = tpu.reciprocal %53 {approx = true} : vector<16x1xf32> -> vector<16x1xf32>
    %55 = vector.broadcast %54 : vector<16x1xf32> to vector<16x16xf32>
    %56 = arith.mulf %49, %55 : vector<16x16xf32>
    %57 = arith.truncf %56 : vector<16x16xf32> to vector<16x16xbf16>
    %58 = arith.truncf %7 : vector<16x128xf32> to vector<16x128xbf16>
    %cst_30 = arith.constant dense<0.000000e+00> : vector<16x128xf32>
    %59 = tpu.matmul %57, %58, %cst_30 {dimension_numbers = #tpu.dot_dimension_numbers<[1], [0], [0], [1], [0, 0, 1, 1], [], []>} : vector<16x16xbf16>, vector<16x128xbf16>, vector<16x128xf32> -> vector<16x128xf32>
    %c0_31 = arith.constant 0 : index
    %c0_32 = arith.constant 0 : index
    %60 = vector.load %arg11[%c0_31, %c0_32] : memref<1x128xf32, #tpu.memory_space<vmem>>, vector<1x128xf32>
    %61 = vector.broadcast %60 : vector<1x128xf32> to vector<16x128xf32>
    %62 = arith.addf %59, %61 : vector<16x128xf32>
    %cst_33 = arith.constant 0.000000e+00 : f32
    %63 = vector.broadcast %cst_33 : f32 to vector<16x128xf32>
    %64 = arith.maximumf %62, %63 : vector<16x128xf32>
    %c0_34 = arith.constant 0 : index
    %c0_35 = arith.constant 0 : index
    %65 = vector.load %arg14[%c0_34, %c0_35] : memref<1x128xf32, #tpu.memory_space<vmem>>, vector<1x128xf32>
    %66 = vector.broadcast %65 : vector<1x128xf32> to vector<16x128xf32>
    %67 = arith.subf %64, %66 : vector<16x128xf32>
    %c0_36 = arith.constant 0 : index
    %c0_37 = arith.constant 0 : index
    %68 = vector.load %arg15[%c0_36, %c0_37] : memref<1x128xf32, #tpu.memory_space<vmem>>, vector<1x128xf32>
    %cst_38 = arith.constant 9.99999974E-6 : f32
    %69 = vector.broadcast %cst_38 : f32 to vector<1x128xf32>
    %70 = arith.addf %68, %69 : vector<1x128xf32>
    %71 = math.rsqrt %70 : vector<1x128xf32>
    %72 = vector.broadcast %71 : vector<1x128xf32> to vector<16x128xf32>
    %73 = arith.mulf %67, %72 : vector<16x128xf32>
    %c0_39 = arith.constant 0 : index
    %c0_40 = arith.constant 0 : index
    %74 = vector.load %arg12[%c0_39, %c0_40] : memref<1x128xf32, #tpu.memory_space<vmem>>, vector<1x128xf32>
    %75 = vector.broadcast %74 : vector<1x128xf32> to vector<16x128xf32>
    %76 = arith.mulf %73, %75 : vector<16x128xf32>
    %c0_41 = arith.constant 0 : index
    %c0_42 = arith.constant 0 : index
    %77 = vector.load %arg13[%c0_41, %c0_42] : memref<1x128xf32, #tpu.memory_space<vmem>>, vector<1x128xf32>
    %78 = vector.broadcast %77 : vector<1x128xf32> to vector<16x128xf32>
    %79 = arith.addf %76, %78 : vector<16x128xf32>
    %c0_43 = arith.constant 0 : index
    %c0_44 = arith.constant 0 : index
    %80 = vector.load %arg16[%c0_43, %c0_44] : memref<16x128xf32, #tpu.memory_space<vmem>>, vector<16x128xf32>
    tpu.vector_store %arg16[%c0_43, %c0_44], %79 {strides = array<i32>} : memref<16x128xf32, #tpu.memory_space<vmem>>, vector<16x128xf32>,
    return
  }
  func.func @transform_0(%arg0: i32) -> (i32, i32) {
    %c0_i32 = arith.constant 0 : i32
    %c0_i32_0 = arith.constant 0 : i32
    %c0_i32_1 = arith.constant 0 : i32
    return %c0_i32, %c0_i32_0 : i32, i32
  }
  func.func @transform_1(%arg0: i32) -> (i32, i32) {
    %c0_i32 = arith.constant 0 : i32
    %c0_i32_0 = arith.constant 0 : i32
    return %arg0, %c0_i32 : i32, i32
  }
  func.func @transform_2(%arg0: i32) -> (i32, i32, i32) {
    %c0_i32 = arith.constant 0 : i32
    %c0_i32_0 = arith.constant 0 : i32
    %c0_i32_1 = arith.constant 0 : i32
    return %arg0, %c0_i32, %c0_i32_0 : i32, i32, i32
  }
  func.func @transform_3(%arg0: i32) -> (i32, i32) {
    %c0_i32 = arith.constant 0 : i32
    %c0_i32_0 = arith.constant 0 : i32
    return %arg0, %c0_i32 : i32, i32
  }
  func.func @transform_4(%arg0: i32) -> (i32, i32) {
    %c0_i32 = arith.constant 0 : i32
    %c0_i32_0 = arith.constant 0 : i32
    %c0_i32_1 = arith.constant 0 : i32
    return %c0_i32, %c0_i32_0 : i32, i32
  }
  func.func @transform_5(%arg0: i32) -> (i32, i32) {
    %c0_i32 = arith.constant 0 : i32
    %c0_i32_0 = arith.constant 0 : i32
    %c0_i32_1 = arith.constant 0 : i32
    return %c0_i32, %c0_i32_0 : i32, i32
  }
  func.func @transform_6(%arg0: i32) -> (i32, i32) {
    %c0_i32 = arith.constant 0 : i32
    %c0_i32_0 = arith.constant 0 : i32
    %c0_i32_1 = arith.constant 0 : i32
    return %c0_i32, %c0_i32_0 : i32, i32
  }
  func.func @transform_7(%arg0: i32) -> (i32, i32) {
    %c0_i32 = arith.constant 0 : i32
    %c0_i32_0 = arith.constant 0 : i32
    %c0_i32_1 = arith.constant 0 : i32
    return %c0_i32, %c0_i32_0 : i32, i32
  }
  func.func @transform_8(%arg0: i32) -> (i32, i32) {
    %c0_i32 = arith.constant 0 : i32
    %c0_i32_0 = arith.constant 0 : i32
    %c0_i32_1 = arith.constant 0 : i32
    return %c0_i32, %c0_i32_0 : i32, i32
  }
  func.func @transform_9(%arg0: i32) -> (i32, i32) {
    %c0_i32 = arith.constant 0 : i32
    %c0_i32_0 = arith.constant 0 : i32
    %c0_i32_1 = arith.constant 0 : i32
    return %c0_i32, %c0_i32_0 : i32, i32
  }
  func.func @transform_10(%arg0: i32) -> (i32, i32) {
    %c0_i32 = arith.constant 0 : i32
    %c0_i32_0 = arith.constant 0 : i32
    %c0_i32_1 = arith.constant 0 : i32
    return %c0_i32, %c0_i32_0 : i32, i32
  }
  func.func @transform_11(%arg0: i32) -> (i32, i32) {
    %c0_i32 = arith.constant 0 : i32
    %c0_i32_0 = arith.constant 0 : i32
    %c0_i32_1 = arith.constant 0 : i32
    return %c0_i32, %c0_i32_0 : i32, i32
  }
  func.func @transform_12(%arg0: i32) -> (i32, i32) {
    %c0_i32 = arith.constant 0 : i32
    %c0_i32_0 = arith.constant 0 : i32
    %c0_i32_1 = arith.constant 0 : i32
    return %c0_i32, %c0_i32_0 : i32, i32
  }
  func.func @transform_13(%arg0: i32) -> (i32, i32) {
    %c0_i32 = arith.constant 0 : i32
    %c0_i32_0 = arith.constant 0 : i32
    %c0_i32_1 = arith.constant 0 : i32
    return %c0_i32, %c0_i32_0 : i32, i32
  }
  func.func @transform_14(%arg0: i32) -> (i32, i32) {
    %c0_i32 = arith.constant 0 : i32
    %c0_i32_0 = arith.constant 0 : i32
    %c0_i32_1 = arith.constant 0 : i32
    return %c0_i32, %c0_i32_0 : i32, i32
  }
  func.func @transform_15(%arg0: i32) -> (i32, i32) {
    %c0_i32 = arith.constant 0 : i32
    %c0_i32_0 = arith.constant 0 : i32
    return %arg0, %c0_i32 : i32, i32
  }
}

</mosaic_0001>

<llo_original>
// kernel: tpu_custom_call.1
$region0: #{tpu_custom_call.1}
  #allocation0 [shape = 'u32[]', space=smem, size = 0x4, offset = 0x4, fixed_abs, tag = 'smem constant byte address 0x4 - core index']
  #allocation1 [shape = 'u32[144,128]{1,0:T(1,128)}', space=vmem, size = 0x12000, scoped, tag = 'internal scratch']
  %s0 = inlined_call_operand.vmem [shape: f32[16,128], index: 0, kind: input, shape index: {}]
  %s1 = inlined_call_operand.vmem [shape: f32[16,128], index: 1, kind: input, shape index: {}]
  %s2 = inlined_call_operand.vmem [shape: f32[16,16,4], index: 2, kind: input, shape index: {}]
  %s3 = inlined_call_operand.vmem [shape: f32[16,16], index: 3, kind: input, shape index: {}]
  %s4 = inlined_call_operand.vmem [shape: f32[128,128], index: 4, kind: input, shape index: {}]
  %s5 = inlined_call_operand.vmem [shape: f32[1,128], index: 5, kind: input, shape index: {}]
  %s6 = inlined_call_operand.vmem [shape: f32[128,128], index: 6, kind: input, shape index: {}]
  %s7 = inlined_call_operand.vmem [shape: f32[1,128], index: 7, kind: input, shape index: {}]
  %s8 = inlined_call_operand.vmem [shape: f32[4,128], index: 8, kind: input, shape index: {}]
  %s9 = inlined_call_operand.vmem [shape: f32[1,128], index: 9, kind: input, shape index: {}]
  %s10 = inlined_call_operand.vmem [shape: f32[1,128], index: 10, kind: input, shape index: {}]
  %s11 = inlined_call_operand.vmem [shape: f32[1,128], index: 11, kind: input, shape index: {}]
  %s12 = inlined_call_operand.vmem [shape: f32[1,128], index: 12, kind: input, shape index: {}]
  %s13 = inlined_call_operand.vmem [shape: f32[1,128], index: 13, kind: input, shape index: {}]
  %s14 = inlined_call_operand.vmem [shape: f32[1,128], index: 14, kind: input, shape index: {}]
  %s15 = inlined_call_operand.hbm [shape: f32[16,128], index: 15, kind: output, shape index: {}]
  %s16 = sld [smem:[#allocation0]]
  $region70: #{tpu_custom_call.1} parent=0
    _
  %s18 = ssub.s32 1, %s16
  %s19 = scalar_select 0, %s18, %s16
  $region1: #{tpu_custom_call.1} parent=0
    #allocation2 [shape = 'u8[8192]{0}', space=vmem, size = 0x2000, scoped, tag = 'output window, operand 0, single buffered']
    #allocation3 [shape = 's32[1]{0}', space=sflag, size = 0x4, scoped, tag = 'scoped memory for tpu_custom_call.1']
    %20 = vsyncpa [#allocation3], 0
    // Predicated region
    $region2: #{tpu_custom_call.1} parent=1 // pred_check
      _
    $region3: #{tpu_custom_call.1} parent=1 // pred_check_branch
      %22 = sbr.rel (0) target = $region5
    $region4: #{tpu_custom_call.1} parent=1 // pred_region
      _
    $region5: #{tpu_custom_call.1} parent=1 // pred_fallthru
      _
    // Predicated region
    $region6: #{tpu_custom_call.1} parent=1 // pred_check
      _
    $region7: #{tpu_custom_call.1} parent=1 // pred_check_branch
      %24 = sbr.rel (0) target = $region9
    $region8: #{tpu_custom_call.1} parent=1 // pred_region
      _
    $region9: #{tpu_custom_call.1} parent=1 // pred_fallthru
      _
    // Predicated region
    $region10: #{tpu_custom_call.1} parent=1 // pred_check
      _
    $region11: #{tpu_custom_call.1} parent=1 // pred_check_branch
      %26 = sbr.rel (0) target = $region13
    $region12: #{tpu_custom_call.1} parent=1 // pred_region
      _
    $region13: #{tpu_custom_call.1} parent=1 // pred_fallthru
      _
    // Predicated region
    $region14: #{tpu_custom_call.1} parent=1 // pred_check
      _
    $region15: #{tpu_custom_call.1} parent=1 // pred_check_branch
      %28 = sbr.rel (0) target = $region17
    $region16: #{tpu_custom_call.1} parent=1 // pred_region
      _
    $region17: #{tpu_custom_call.1} parent=1 // pred_fallthru
      _
    // Predicated region
    $region18: #{tpu_custom_call.1} parent=1 // pred_check
      _
    $region19: #{tpu_custom_call.1} parent=1 // pred_check_branch
      %30 = sbr.rel (0) target = $region21
    $region20: #{tpu_custom_call.1} parent=1 // pred_region
      _
    $region21: #{tpu_custom_call.1} parent=1 // pred_fallthru
      _
    // Predicated region
    $region22: #{tpu_custom_call.1} parent=1 // pred_check
      _
    $region23: #{tpu_custom_call.1} parent=1 // pred_check_branch
      %32 = sbr.rel (0) target = $region25
    $region24: #{tpu_custom_call.1} parent=1 // pred_region
      _
    $region25: #{tpu_custom_call.1} parent=1 // pred_fallthru
      _
    // Predicated region
    $region26: #{tpu_custom_call.1} parent=1 // pred_check
      _
    $region27: #{tpu_custom_call.1} parent=1 // pred_check_branch
      %34 = sbr.rel (0) target = $region29
    $region28: #{tpu_custom_call.1} parent=1 // pred_region
      _
    $region29: #{tpu_custom_call.1} parent=1 // pred_fallthru
      _
    // Predicated region
    $region30: #{tpu_custom_call.1} parent=1 // pred_check
      _
    $region31: #{tpu_custom_call.1} parent=1 // pred_check_branch
      %36 = sbr.rel (0) target = $region33
    $region32: #{tpu_custom_call.1} parent=1 // pred_region
      _
    $region33: #{tpu_custom_call.1} parent=1 // pred_fallthru
      _
    // Predicated region
    $region34: #{tpu_custom_call.1} parent=1 // pred_check
      _
    $region35: #{tpu_custom_call.1} parent=1 // pred_check_branch
      %38 = sbr.rel (0) target = $region37
    $region36: #{tpu_custom_call.1} parent=1 // pred_region
      _
    $region37: #{tpu_custom_call.1} parent=1 // pred_fallthru
      _
    // Predicated region
    $region38: #{tpu_custom_call.1} parent=1 // pred_check
      _
    $region39: #{tpu_custom_call.1} parent=1 // pred_check_branch
      %40 = sbr.rel (0) target = $region41
    $region40: #{tpu_custom_call.1} parent=1 // pred_region
      _
    $region41: #{tpu_custom_call.1} parent=1 // pred_fallthru
      _
    // Predicated region
    $region42: #{tpu_custom_call.1} parent=1 // pred_check
      _
    $region43: #{tpu_custom_call.1} parent=1 // pred_check_branch
      %42 = sbr.rel (0) target = $region45
    $region44: #{tpu_custom_call.1} parent=1 // pred_region
      _
    $region45: #{tpu_custom_call.1} parent=1 // pred_fallthru
      _
    // Predicated region
    $region46: #{tpu_custom_call.1} parent=1 // pred_check
      _
    $region47: #{tpu_custom_call.1} parent=1 // pred_check_branch
      %44 = sbr.rel (0) target = $region49
    $region48: #{tpu_custom_call.1} parent=1 // pred_region
      _
    $region49: #{tpu_custom_call.1} parent=1 // pred_fallthru
      _
    // Predicated region
    $region50: #{tpu_custom_call.1} parent=1 // pred_check
      _
    $region51: #{tpu_custom_call.1} parent=1 // pred_check_branch
      %46 = sbr.rel (0) target = $region53
    $region52: #{tpu_custom_call.1} parent=1 // pred_region
      _
    $region53: #{tpu_custom_call.1} parent=1 // pred_fallthru
      _
    // Predicated region
    $region54: #{tpu_custom_call.1} parent=1 // pred_check
      _
    $region55: #{tpu_custom_call.1} parent=1 // pred_check_branch
      %48 = sbr.rel (0) target = $region57
    $region56: #{tpu_custom_call.1} parent=1 // pred_region
      _
    $region57: #{tpu_custom_call.1} parent=1 // pred_fallthru
      _
    // Predicated region
    $region58: #{tpu_custom_call.1} parent=1 // pred_check
      _
    $region59: #{tpu_custom_call.1} parent=1 // pred_check_branch
      %50 = sbr.rel (0) target = $region61
    $region60: #{tpu_custom_call.1} parent=1 // pred_region
      _
    $region61: #{tpu_custom_call.1} parent=1 // pred_fallthru
      _
    %v52 = vld [vmem:[%s0] sm:$0xff]
    %v53 = vld [vmem:[%s0 + $0x8] sm:$0xff]
    %v54 = vpack.c.bf16 %v53, %v52
    %v55 = vld [vmem:[%s4] sm:$0xff]
    %v56 = vld [vmem:[%s4 + $0x8] sm:$0xff]
    %v57 = vld [vmem:[%s4 + $0x10] sm:$0xff]
    %v58 = vld [vmem:[%s4 + $0x18] sm:$0xff]
    %v59 = vld [vmem:[%s4 + $0x20] sm:$0xff]
    %v60 = vld [vmem:[%s4 + $0x28] sm:$0xff]
    %v61 = vld [vmem:[%s4 + $0x30] sm:$0xff]
    %v62 = vld [vmem:[%s4 + $0x38] sm:$0xff]
    %v63 = vld [vmem:[%s4 + $0x40] sm:$0xff]
    %v64 = vld [vmem:[%s4 + $0x48] sm:$0xff]
    %v65 = vld [vmem:[%s4 + $0x50] sm:$0xff]
    %v66 = vld [vmem:[%s4 + $0x58] sm:$0xff]
    %v67 = vld [vmem:[%s4 + $0x60] sm:$0xff]
    %v68 = vld [vmem:[%s4 + $0x68] sm:$0xff]
    %v69 = vld [vmem:[%s4 + $0x70] sm:$0xff]
    %v70 = vld [vmem:[%s4 + $0x78] sm:$0xff]
    %v71 = vpack.c.bf16 %v56, %v55
    %v72 = vpack.c.bf16 %v58, %v57
    %v73 = vpack.c.bf16 %v60, %v59
    %v74 = vpack.c.bf16 %v62, %v61
    %v75 = vpack.c.bf16 %v64, %v63
    %v76 = vpack.c.bf16 %v66, %v65
    %v77 = vpack.c.bf16 %v68, %v67
    %v78 = vpack.c.bf16 %v70, %v69
    %v79 = vld [vmem:[%s5] sm:$0x1]
    %v81 = vlaneseq
    %v82 = vshrl.u32 %v81, 7
    %v83 = vsub.s32 0, %v82
    %v84 = vrot.slane %v79, %v83
    %86 = vmatprep.subr.bf16.mxu0 0
    %87 = vmatpush1.bf16.msra.mxu0 %v71
    %88 = vmatprep.subr.bf16.mxu0 0
    %89 = vmatpush1.bf16.msra.mxu0 %v72
    %90 = vmatprep.subr.bf16.mxu0 0
    %91 = vmatpush1.bf16.msra.mxu0 %v73
    %92 = vmatprep.subr.bf16.mxu0 0
    %93 = vmatpush1.bf16.msra.mxu0 %v74
    %94 = vmatprep.subr.bf16.mxu0 0
    %95 = vmatpush1.bf16.msra.mxu0 %v75
    %96 = vmatprep.subr.bf16.mxu0 0
    %97 = vmatpush1.bf16.msra.mxu0 %v76
    %98 = vmatprep.subr.bf16.mxu0 0
    %99 = vmatpush1.bf16.msra.mxu0 %v77
    %100 = vmatprep.subr.bf16.mxu0 0
    %101 = vmatpush1.bf16.msra.mxu0 %v78
    %102 = vmatprep.subr.bf16.mxu0 0
    %103 = vmatpush1.bf16.msra.mxu0 0
    %104 = vmatprep.subr.bf16.mxu0 0
    %105 = vmatpush1.bf16.msra.mxu0 0
    %106 = vmatprep.subr.bf16.mxu0 0
    %107 = vmatpush1.bf16.msra.mxu0 0
    %108 = vmatprep.subr.bf16.mxu0 0
    %109 = vmatpush1.bf16.msra.mxu0 0
    %110 = vmatprep.subr.bf16.mxu0 0
    %111 = vmatpush1.bf16.msra.mxu0 0
    %112 = vmatprep.subr.bf16.mxu0 0
    %113 = vmatpush1.bf16.msra.mxu0 0
    %114 = vmatprep.subr.bf16.mxu0 0
    %115 = vmatpush1.bf16.msra.mxu0 0
    %116 = vmatprep.subr.bf16.mxu0 0
    %117 = vmatpush1.bf16.msra.mxu0 0
    %118 = vmatprep.mubr.bf16.mxu0 0
    %119 = vmatmul.mubr.bf16.gmra.mrb[0].mxu0 %v54
    %v120 = vpop.f32.mrb[0].mxu0
    %v121 = vadd.f32 %v84, %v120
    %v122 = vpop.f32.mrb[0].mxu0
    %v123 = vpop.f32.mrb[0].mxu0
    %v124 = vadd.f32 %v84, %v123
    %v125 = vpop.f32.mrb[0].mxu0
    %126 = vdwg.mxu0
    %v127 = vld [vmem:[%s1] sm:$0xff]
    %v128 = vld [vmem:[%s1 + $0x8] sm:$0xff]
    %v129 = vpack.c.bf16 %v128, %v127
    %v130 = vld [vmem:[%s6] sm:$0xff]
    %v131 = vld [vmem:[%s6 + $0x8] sm:$0xff]
    %v132 = vld [vmem:[%s6 + $0x10] sm:$0xff]
    %v133 = vld [vmem:[%s6 + $0x18] sm:$0xff]
    %v134 = vld [vmem:[%s6 + $0x20] sm:$0xff]
    %v135 = vld [vmem:[%s6 + $0x28] sm:$0xff]
    %v136 = vld [vmem:[%s6 + $0x30] sm:$0xff]
    %v137 = vld [vmem:[%s6 + $0x38] sm:$0xff]
    %v138 = vld [vmem:[%s6 + $0x40] sm:$0xff]
    %v139 = vld [vmem:[%s6 + $0x48] sm:$0xff]
    %v140 = vld [vmem:[%s6 + $0x50] sm:$0xff]
    %v141 = vld [vmem:[%s6 + $0x58] sm:$0xff]
    %v142 = vld [vmem:[%s6 + $0x60] sm:$0xff]
    %v143 = vld [vmem:[%s6 + $0x68] sm:$0xff]
    %v144 = vld [vmem:[%s6 + $0x70] sm:$0xff]
    %v145 = vld [vmem:[%s6 + $0x78] sm:$0xff]
    %v146 = vpack.c.bf16 %v131, %v130
    %v147 = vpack.c.bf16 %v133, %v132
    %v148 = vpack.c.bf16 %v135, %v134
    %v149 = vpack.c.bf16 %v137, %v136
    %v150 = vpack.c.bf16 %v139, %v138
    %v151 = vpack.c.bf16 %v141, %v140
    %v152 = vpack.c.bf16 %v143, %v142
    %v153 = vpack.c.bf16 %v145, %v144
    %v154 = vld [vmem:[%s7] sm:$0x1]
    %v156 = vlaneseq
    %v157 = vshrl.u32 %v156, 7
    %v158 = vsub.s32 0, %v157
    %v159 = vrot.slane %v154, %v158
    %161 = vmatprep.subr.bf16.mxu0 0
    %162 = vmatpush1.bf16.msra.mxu0 %v146
    %163 = vmatprep.subr.bf16.mxu0 0
    %164 = vmatpush1.bf16.msra.mxu0 %v147
    %165 = vmatprep.subr.bf16.mxu0 0
    %166 = vmatpush1.bf16.msra.mxu0 %v148
    %167 = vmatprep.subr.bf16.mxu0 0
    %168 = vmatpush1.bf16.msra.mxu0 %v149
    %169 = vmatprep.subr.bf16.mxu0 0
    %170 = vmatpush1.bf16.msra.mxu0 %v150
    %171 = vmatprep.subr.bf16.mxu0 0
    %172 = vmatpush1.bf16.msra.mxu0 %v151
    %173 = vmatprep.subr.bf16.mxu0 0
    %174 = vmatpush1.bf16.msra.mxu0 %v152
    %175 = vmatprep.subr.bf16.mxu0 0
    %176 = vmatpush1.bf16.msra.mxu0 %v153
    %177 = vmatprep.subr.bf16.mxu0 0
    %178 = vmatpush1.bf16.msra.mxu0 0
    %179 = vmatprep.subr.bf16.mxu0 0
    %180 = vmatpush1.bf16.msra.mxu0 0
    %181 = vmatprep.subr.bf16.mxu0 0
    %182 = vmatpush1.bf16.msra.mxu0 0
    %183 = vmatprep.subr.bf16.mxu0 0
    %184 = vmatpush1.bf16.msra.mxu0 0
    %185 = vmatprep.subr.bf16.mxu0 0
    %186 = vmatpush1.bf16.msra.mxu0 0
    %187 = vmatprep.subr.bf16.mxu0 0
    %188 = vmatpush1.bf16.msra.mxu0 0
    %189 = vmatprep.subr.bf16.mxu0 0
    %190 = vmatpush1.bf16.msra.mxu0 0
    %191 = vmatprep.subr.bf16.mxu0 0
    %192 = vmatpush1.bf16.msra.mxu0 0
    %193 = vmatprep.mubr.bf16.mxu0 0
    %194 = vmatmul.mubr.bf16.gmra.mrb[0].mxu0 %v129
    %v195 = vpop.f32.mrb[0].mxu0
    %v196 = vadd.f32 %v159, %v195
    %v197 = vpop.f32.mrb[0].mxu0
    %v198 = vpop.f32.mrb[0].mxu0
    %v199 = vadd.f32 %v159, %v198
    %v200 = vpop.f32.mrb[0].mxu0
    %201 = vdwg.mxu0
    %v202 = vld [vmem:[%s2] sm:$0xff]
    %v203 = vld [vmem:[%s2 + $0x8] sm:$0xff]
    %v204 = vld [vmem:[%s2 + $0x10] sm:$0xff]
    %v205 = vld [vmem:[%s2 + $0x18] sm:$0xff]
    %v206 = vld [vmem:[%s2 + $0x20] sm:$0xff]
    %v207 = vld [vmem:[%s2 + $0x28] sm:$0xff]
    %v208 = vld [vmem:[%s2 + $0x30] sm:$0xff]
    %v209 = vld [vmem:[%s2 + $0x38] sm:$0xff]
    %v210 = vld [vmem:[%s2 + $0x40] sm:$0xff]
    %v211 = vld [vmem:[%s2 + $0x48] sm:$0xff]
    %v212 = vld [vmem:[%s2 + $0x50] sm:$0xff]
    %v213 = vld [vmem:[%s2 + $0x58] sm:$0xff]
    %v214 = vld [vmem:[%s2 + $0x60] sm:$0xff]
    %v215 = vld [vmem:[%s2 + $0x68] sm:$0xff]
    %v216 = vld [vmem:[%s2 + $0x70] sm:$0xff]
    %v217 = vld [vmem:[%s2 + $0x78] sm:$0xff]
    %v218 = vld [vmem:[%s2 + $0x80] sm:$0xff]
    %v219 = vld [vmem:[%s2 + $0x88] sm:$0xff]
    %v220 = vld [vmem:[%s2 + $0x90] sm:$0xff]
    %v221 = vld [vmem:[%s2 + $0x98] sm:$0xff]
    %v222 = vld [vmem:[%s2 + $0xa0] sm:$0xff]
    %v223 = vld [vmem:[%s2 + $0xa8] sm:$0xff]
    %v224 = vld [vmem:[%s2 + $0xb0] sm:$0xff]
    %v225 = vld [vmem:[%s2 + $0xb8] sm:$0xff]
    %v226 = vld [vmem:[%s2 + $0xc0] sm:$0xff]
    %v227 = vld [vmem:[%s2 + $0xc8] sm:$0xff]
    %v228 = vld [vmem:[%s2 + $0xd0] sm:$0xff]
    %v229 = vld [vmem:[%s2 + $0xd8] sm:$0xff]
    %v230 = vld [vmem:[%s2 + $0xe0] sm:$0xff]
    %v231 = vld [vmem:[%s2 + $0xe8] sm:$0xff]
    %v232 = vld [vmem:[%s2 + $0xf0] sm:$0xff]
    %v233 = vld [vmem:[%s2 + $0xf8] sm:$0xff]
    %v234 = vpack.c.bf16 %v203, %v202
    %v235 = vpack.c.bf16 %v205, %v204
    %v236 = vpack.c.bf16 %v207, %v206
    %v237 = vpack.c.bf16 %v209, %v208
    %v238 = vpack.c.bf16 %v211, %v210
    %v239 = vpack.c.bf16 %v213, %v212
    %v240 = vpack.c.bf16 %v215, %v214
    %v241 = vpack.c.bf16 %v217, %v216
    %v242 = vpack.c.bf16 %v219, %v218
    %v243 = vpack.c.bf16 %v221, %v220
    %v244 = vpack.c.bf16 %v223, %v222
    %v245 = vpack.c.bf16 %v225, %v224
    %v246 = vpack.c.bf16 %v227, %v226
    %v247 = vpack.c.bf16 %v229, %v228
    %v248 = vpack.c.bf16 %v231, %v230
    %v249 = vpack.c.bf16 %v233, %v232
    %v250 = vld [vmem:[%s8] sm:$0xf]
    %v251 = vpack.c.bf16 %v250, %v250
    %vm252 = vcmask 31744
    %v254 = vsel %vm252, %v234, 0
    %v257 = vsel %vm252, %v235, 0
    %v260 = vsel %vm252, %v236, 0
    %v263 = vsel %vm252, %v237, 0
    %v266 = vsel %vm252, %v238, 0
    %v269 = vsel %vm252, %v239, 0
    %v272 = vsel %vm252, %v240, 0
    %v275 = vsel %vm252, %v241, 0
    %v278 = vsel %vm252, %v242, 0
    %v281 = vsel %vm252, %v243, 0
    %v284 = vsel %vm252, %v244, 0
    %v287 = vsel %vm252, %v245, 0
    %v290 = vsel %vm252, %v246, 0
    %v293 = vsel %vm252, %v247, 0
    %v296 = vsel %vm252, %v248, 0
    %v299 = vsel %vm252, %v249, 0
    %vm301 = vcmask 1041408
    %v303 = vsel %vm301, %v251, 0
    %305 = vmatprep.subr.bf16.mxu0 0
    %306 = vmatpush1.bf16.msra.mxu0 %v303
    %307 = vmatprep.subr.bf16.mxu0 0
    %308 = vmatpush1.bf16.msra.mxu0 0
    %309 = vmatprep.subr.bf16.mxu0 0
    %310 = vmatpush1.bf16.msra.mxu0 0
    %311 = vmatprep.subr.bf16.mxu0 0
    %312 = vmatpush1.bf16.msra.mxu0 0
    %313 = vmatprep.subr.bf16.mxu0 0
    %314 = vmatpush1.bf16.msra.mxu0 0
    %315 = vmatprep.subr.bf16.mxu0 0
    %316 = vmatpush1.bf16.msra.mxu0 0
    %317 = vmatprep.subr.bf16.mxu0 0
    %318 = vmatpush1.bf16.msra.mxu0 0
    %319 = vmatprep.subr.bf16.mxu0 0
    %320 = vmatpush1.bf16.msra.mxu0 0
    %321 = vmatprep.subr.bf16.mxu0 0
    %322 = vmatpush1.bf16.msra.mxu0 0
    %323 = vmatprep.subr.bf16.mxu0 0
    %324 = vmatpush1.bf16.msra.mxu0 0
    %325 = vmatprep.subr.bf16.mxu0 0
    %326 = vmatpush1.bf16.msra.mxu0 0
    %327 = vmatprep.subr.bf16.mxu0 0
    %328 = vmatpush1.bf16.msra.mxu0 0
    %329 = vmatprep.subr.bf16.mxu0 0
    %330 = vmatpush1.bf16.msra.mxu0 0
    %331 = vmatprep.subr.bf16.mxu0 0
    %332 = vmatpush1.bf16.msra.mxu0 0
    %333 = vmatprep.subr.bf16.mxu0 0
    %334 = vmatpush1.bf16.msra.mxu0 0
    %335 = vmatprep.subr.bf16.mxu0 0
    %336 = vmatpush1.bf16.msra.mxu0 0
    %337 = vmatprep.mubr.bf16.mxu0 0
    %338 = vmatmul.mubr.bf16.gmra.mrb[0].mxu0 %v254
    %v339 = vpop.f32.mrb[0].mxu0
    %v340 = vadd.f32 0.0, %v339
    %v341 = vpop.f32.mrb[0].mxu0
    %v342 = vpop.f32.mrb[0].mxu0
    %v343 = vadd.f32 0.0, %v342
    %v344 = vpop.f32.mrb[0].mxu0
    %345 = vmatprep.mubr.bf16.mxu0 0
    %346 = vmatmul.mubr.bf16.gmra.mrb[0].mxu0 %v257
    %v347 = vpop.f32.mrb[0].mxu0
    %v348 = vadd.f32 0.0, %v347
    %v349 = vpop.f32.mrb[0].mxu0
    %v350 = vpop.f32.mrb[0].mxu0
    %v351 = vadd.f32 0.0, %v350
    %v352 = vpop.f32.mrb[0].mxu0
    %353 = vmatprep.mubr.bf16.mxu0 0
    %354 = vmatmul.mubr.bf16.gmra.mrb[0].mxu0 %v260
    %v355 = vpop.f32.mrb[0].mxu0
    %v356 = vadd.f32 0.0, %v355
    %v357 = vpop.f32.mrb[0].mxu0
    %v358 = vpop.f32.mrb[0].mxu0
    %v359 = vadd.f32 0.0, %v358
    %v360 = vpop.f32.mrb[0].mxu0
    %361 = vmatprep.mubr.bf16.mxu0 0
    %362 = vmatmul.mubr.bf16.gmra.mrb[0].mxu0 %v263
    %v363 = vpop.f32.mrb[0].mxu0
    %v364 = vadd.f32 0.0, %v363
    %v365 = vpop.f32.mrb[0].mxu0
    %v366 = vpop.f32.mrb[0].mxu0
    %v367 = vadd.f32 0.0, %v366
    %v368 = vpop.f32.mrb[0].mxu0
    %369 = vmatprep.mubr.bf16.mxu0 0
    %370 = vmatmul.mubr.bf16.gmra.mrb[0].mxu0 %v266
    %v371 = vpop.f32.mrb[0].mxu0
    %v372 = vadd.f32 0.0, %v371
    %v373 = vpop.f32.mrb[0].mxu0
    %v374 = vpop.f32.mrb[0].mxu0
    %v375 = vadd.f32 0.0, %v374
    %v376 = vpop.f32.mrb[0].mxu0
    %377 = vmatprep.mubr.bf16.mxu0 0
    %378 = vmatmul.mubr.bf16.gmra.mrb[0].mxu0 %v269
    %v379 = vpop.f32.mrb[0].mxu0
    %v380 = vadd.f32 0.0, %v379
    %v381 = vpop.f32.mrb[0].mxu0
    %v382 = vpop.f32.mrb[0].mxu0
    %v383 = vadd.f32 0.0, %v382
    %v384 = vpop.f32.mrb[0].mxu0
    %385 = vmatprep.mubr.bf16.mxu0 0
    %386 = vmatmul.mubr.bf16.gmra.mrb[0].mxu0 %v272
    %v387 = vpop.f32.mrb[0].mxu0
    %v388 = vadd.f32 0.0, %v387
    %v389 = vpop.f32.mrb[0].mxu0
    %v390 = vpop.f32.mrb[0].mxu0
    %v391 = vadd.f32 0.0, %v390
    %v392 = vpop.f32.mrb[0].mxu0
    %393 = vmatprep.mubr.bf16.mxu0 0
    %394 = vmatmul.mubr.bf16.gmra.mrb[0].mxu0 %v275
    %v395 = vpop.f32.mrb[0].mxu0
    %v396 = vadd.f32 0.0, %v395
    %v397 = vpop.f32.mrb[0].mxu0
    %v398 = vpop.f32.mrb[0].mxu0
    %v399 = vadd.f32 0.0, %v398
    %v400 = vpop.f32.mrb[0].mxu0
    %401 = vmatprep.mubr.bf16.mxu0 0
    %402 = vmatmul.mubr.bf16.gmra.mrb[0].mxu0 %v278
    %v403 = vpop.f32.mrb[0].mxu0
    %v404 = vadd.f32 0.0, %v403
    %v405 = vpop.f32.mrb[0].mxu0
    %v406 = vpop.f32.mrb[0].mxu0
    %v407 = vadd.f32 0.0, %v406
    %v408 = vpop.f32.mrb[0].mxu0
    %409 = vmatprep.mubr.bf16.mxu0 0
    %410 = vmatmul.mubr.bf16.gmra.mrb[0].mxu0 %v281
    %v411 = vpop.f32.mrb[0].mxu0
    %v412 = vadd.f32 0.0, %v411
    %v413 = vpop.f32.mrb[0].mxu0
    %v414 = vpop.f32.mrb[0].mxu0
    %v415 = vadd.f32 0.0, %v414
    %v416 = vpop.f32.mrb[0].mxu0
    %417 = vmatprep.mubr.bf16.mxu0 0
    %418 = vmatmul.mubr.bf16.gmra.mrb[0].mxu0 %v284
    %v419 = vpop.f32.mrb[0].mxu0
    %v420 = vadd.f32 0.0, %v419
    %v421 = vpop.f32.mrb[0].mxu0
    %v422 = vpop.f32.mrb[0].mxu0
    %v423 = vadd.f32 0.0, %v422
    %v424 = vpop.f32.mrb[0].mxu0
    %425 = vmatprep.mubr.bf16.mxu0 0
    %426 = vmatmul.mubr.bf16.gmra.mrb[0].mxu0 %v287
    %v427 = vpop.f32.mrb[0].mxu0
    %v428 = vadd.f32 0.0, %v427
    %v429 = vpop.f32.mrb[0].mxu0
    %v430 = vpop.f32.mrb[0].mxu0
    %v431 = vadd.f32 0.0, %v430
    %v432 = vpop.f32.mrb[0].mxu0
    %433 = vmatprep.mubr.bf16.mxu0 0
    %434 = vmatmul.mubr.bf16.gmra.mrb[0].mxu0 %v290
    %v435 = vpop.f32.mrb[0].mxu0
    %v436 = vadd.f32 0.0, %v435
    %v437 = vpop.f32.mrb[0].mxu0
    %v438 = vpop.f32.mrb[0].mxu0
    %v439 = vadd.f32 0.0, %v438
    %v440 = vpop.f32.mrb[0].mxu0
    %441 = vmatprep.mubr.bf16.mxu0 0
    %442 = vmatmul.mubr.bf16.gmra.mrb[0].mxu0 %v293
    %v443 = vpop.f32.mrb[0].mxu0
    %v444 = vadd.f32 0.0, %v443
    %v445 = vpop.f32.mrb[0].mxu0
    %v446 = vpop.f32.mrb[0].mxu0
    %v447 = vadd.f32 0.0, %v446
    %v448 = vpop.f32.mrb[0].mxu0
    %449 = vmatprep.mubr.bf16.mxu0 0
    %450 = vmatmul.mubr.bf16.gmra.mrb[0].mxu0 %v296
    %v451 = vpop.f32.mrb[0].mxu0
    %v452 = vadd.f32 0.0, %v451
    %v453 = vpop.f32.mrb[0].mxu0
    %v454 = vpop.f32.mrb[0].mxu0
    %v455 = vadd.f32 0.0, %v454
    %v456 = vpop.f32.mrb[0].mxu0
    %457 = vmatprep.mubr.bf16.mxu0 0
    %458 = vmatmul.mubr.bf16.gmra.mrb[0].mxu0 %v299
    %v459 = vpop.f32.mrb[0].mxu0
    %v460 = vadd.f32 0.0, %v459
    %v461 = vpop.f32.mrb[0].mxu0
    %v462 = vpop.f32.mrb[0].mxu0
    %v463 = vadd.f32 0.0, %v462
    %v464 = vpop.f32.mrb[0].mxu0
    %465 = vdwg.mxu0
    %v468 = vcombine.high %v196, %v196
    %v470 = vunpack.c.l.s4 1966171168
    %v471 = vunpack.c.0.s8 %v470
    %v472 = vlaneseq
    %v473 = vshrl.u32 %v472, 7
    %v474 = vsub.s32 %v471, %v473
    %v475 = vrot.slane %v196, %v474
    %v477 = vunpack.c.l.s4 1966171168
    %v478 = vunpack.c.0.s8 %v477
    %v479 = vlaneseq
    %v480 = vshrl.u32 %v479, 7
    %v481 = vsub.s32 %v478, %v480
    %v482 = vrot.slane %v468, %v481
    %v483 = vcombine.high %v475, %v475
    %v484 = vcombine.high %v482, %v482
    %v486 = vunpack.c.l.s4 1966171168
    %v487 = vunpack.c.0.s8 %v486
    %v488 = vlaneseq
    %v489 = vshrl.u32 %v488, 7
    %v490 = vsub.s32 %v487, %v489
    %v491 = vrot.slane %v475, %v490
    %v493 = vunpack.c.l.s4 1966171168
    %v494 = vunpack.c.0.s8 %v493
    %v495 = vlaneseq
    %v496 = vshrl.u32 %v495, 7
    %v497 = vsub.s32 %v494, %v496
    %v498 = vrot.slane %v482, %v497
    %v500 = vunpack.c.l.s4 1966171168
    %v501 = vunpack.c.0.s8 %v500
    %v502 = vlaneseq
    %v503 = vshrl.u32 %v502, 7
    %v504 = vsub.s32 %v501, %v503
    %v505 = vrot.slane %v483, %v504
    %v507 = vunpack.c.l.s4 1966171168
    %v508 = vunpack.c.0.s8 %v507
    %v509 = vlaneseq
    %v510 = vshrl.u32 %v509, 7
    %v511 = vsub.s32 %v508, %v510
    %v512 = vrot.slane %v484, %v511
    %v513 = vcombine.high %v491, %v491
    %v514 = vcombine.high %v498, %v498
    %v515 = vcombine.high %v505, %v505
    %v516 = vcombine.high %v512, %v512
    %v517 = vcombine.high %v199, %v199
    %v519 = vunpack.c.l.s4 1966171168
    %v520 = vunpack.c.0.s8 %v519
    %v521 = vlaneseq
    %v522 = vshrl.u32 %v521, 7
    %v523 = vsub.s32 %v520, %v522
    %v524 = vrot.slane %v199, %v523
    %v526 = vunpack.c.l.s4 1966171168
    %v527 = vunpack.c.0.s8 %v526
    %v528 = vlaneseq
    %v529 = vshrl.u32 %v528, 7
    %v530 = vsub.s32 %v527, %v529
    %v531 = vrot.slane %v517, %v530
    %v532 = vcombine.high %v524, %v524
    %v533 = vcombine.high %v531, %v531
    %v535 = vunpack.c.l.s4 1966171168
    %v536 = vunpack.c.0.s8 %v535
    %v537 = vlaneseq
    %v538 = vshrl.u32 %v537, 7
    %v539 = vsub.s32 %v536, %v538
    %v540 = vrot.slane %v524, %v539
    %v542 = vunpack.c.l.s4 1966171168
    %v543 = vunpack.c.0.s8 %v542
    %v544 = vlaneseq
    %v545 = vshrl.u32 %v544, 7
    %v546 = vsub.s32 %v543, %v545
    %v547 = vrot.slane %v531, %v546
    %v549 = vunpack.c.l.s4 1966171168
    %v550 = vunpack.c.0.s8 %v549
    %v551 = vlaneseq
    %v552 = vshrl.u32 %v551, 7
    %v553 = vsub.s32 %v550, %v552
    %v554 = vrot.slane %v532, %v553
    %v556 = vunpack.c.l.s4 1966171168
    %v557 = vunpack.c.0.s8 %v556
    %v558 = vlaneseq
    %v559 = vshrl.u32 %v558, 7
    %v560 = vsub.s32 %v557, %v559
    %v561 = vrot.slane %v533, %v560
    %v562 = vcombine.high %v540, %v540
    %v563 = vcombine.high %v547, %v547
    %v564 = vcombine.high %v554, %v554
    %v565 = vcombine.high %v561, %v561
    %v566 = vlaneseq
    %v567 = vshrl.u32 %v566, 7
    %v568 = vsub.s32 0, %v567
    %v569 = vrot.slane %v491, %v568
    %v570 = vlaneseq
    %v571 = vshrl.u32 %v570, 7
    %v572 = vsub.s32 0, %v571
    %v573 = vrot.slane %v505, %v572
    %v574 = vlaneseq
    %v575 = vshrl.u32 %v574, 7
    %v576 = vsub.s32 0, %v575
    %v577 = vrot.slane %v513, %v576
    %v578 = vlaneseq
    %v579 = vshrl.u32 %v578, 7
    %v580 = vsub.s32 0, %v579
    %v581 = vrot.slane %v515, %v580
    %v582 = vlaneseq
    %v583 = vshrl.u32 %v582, 7
    %v584 = vsub.s32 0, %v583
    %v585 = vrot.slane %v498, %v584
    %v586 = vlaneseq
    %v587 = vshrl.u32 %v586, 7
    %v588 = vsub.s32 0, %v587
    %v589 = vrot.slane %v512, %v588
    %v590 = vlaneseq
    %v591 = vshrl.u32 %v590, 7
    %v592 = vsub.s32 0, %v591
    %v593 = vrot.slane %v514, %v592
    %v594 = vlaneseq
    %v595 = vshrl.u32 %v594, 7
    %v596 = vsub.s32 0, %v595
    %v597 = vrot.slane %v516, %v596
    %v598 = vlaneseq
    %v599 = vshrl.u32 %v598, 7
    %v600 = vsub.s32 0, %v599
    %v601 = vrot.slane %v540, %v600
    %v602 = vlaneseq
    %v603 = vshrl.u32 %v602, 7
    %v604 = vsub.s32 0, %v603
    %v605 = vrot.slane %v554, %v604
    %v606 = vlaneseq
    %v607 = vshrl.u32 %v606, 7
    %v608 = vsub.s32 0, %v607
    %v609 = vrot.slane %v562, %v608
    %v610 = vlaneseq
    %v611 = vshrl.u32 %v610, 7
    %v612 = vsub.s32 0, %v611
    %v613 = vrot.slane %v564, %v612
    %v614 = vlaneseq
    %v615 = vshrl.u32 %v614, 7
    %v616 = vsub.s32 0, %v615
    %v617 = vrot.slane %v547, %v616
    %v618 = vlaneseq
    %v619 = vshrl.u32 %v618, 7
    %v620 = vsub.s32 0, %v619
    %v621 = vrot.slane %v561, %v620
    %v622 = vlaneseq
    %v623 = vshrl.u32 %v622, 7
    %v624 = vsub.s32 0, %v623
    %v625 = vrot.slane %v563, %v624
    %v626 = vlaneseq
    %v627 = vshrl.u32 %v626, 7
    %v628 = vsub.s32 0, %v627
    %v629 = vrot.slane %v565, %v628
    %v646 = vadd.f32 %v121, %v569
    %v647 = vadd.f32 %v124, %v569
    %v648 = vadd.f32 %v121, %v573
    %v649 = vadd.f32 %v124, %v573
    %v650 = vadd.f32 %v121, %v577
    %v651 = vadd.f32 %v124, %v577
    %v652 = vadd.f32 %v121, %v581
    %v653 = vadd.f32 %v124, %v581
    %v654 = vadd.f32 %v121, %v585
    %v655 = vadd.f32 %v124, %v585
    %v656 = vadd.f32 %v121, %v589
    %v657 = vadd.f32 %v124, %v589
    %v658 = vadd.f32 %v121, %v593
    %v659 = vadd.f32 %v124, %v593
    %v660 = vadd.f32 %v121, %v597
    %v661 = vadd.f32 %v124, %v597
    %v662 = vadd.f32 %v121, %v601
    %v663 = vadd.f32 %v124, %v601
    %v664 = vadd.f32 %v121, %v605
    %v665 = vadd.f32 %v124, %v605
    %v666 = vadd.f32 %v121, %v609
    %v667 = vadd.f32 %v124, %v609
    %v668 = vadd.f32 %v121, %v613
    %v669 = vadd.f32 %v124, %v613
    %v670 = vadd.f32 %v121, %v617
    %v671 = vadd.f32 %v124, %v617
    %v672 = vadd.f32 %v121, %v621
    %v673 = vadd.f32 %v124, %v621
    %v674 = vadd.f32 %v121, %v625
    %v675 = vadd.f32 %v124, %v625
    %v676 = vadd.f32 %v121, %v629
    %v677 = vadd.f32 %v124, %v629
    %v678 = vadd.f32 %v646, %v340
    %v679 = vadd.f32 %v647, %v343
    %v680 = vadd.f32 %v648, %v348
    %v681 = vadd.f32 %v649, %v351
    %v682 = vadd.f32 %v650, %v356
    %v683 = vadd.f32 %v651, %v359
    %v684 = vadd.f32 %v652, %v364
    %v685 = vadd.f32 %v653, %v367
    %v686 = vadd.f32 %v654, %v372
    %v687 = vadd.f32 %v655, %v375
    %v688 = vadd.f32 %v656, %v380
    %v689 = vadd.f32 %v657, %v383
    %v690 = vadd.f32 %v658, %v388
    %v691 = vadd.f32 %v659, %v391
    %v692 = vadd.f32 %v660, %v396
    %v693 = vadd.f32 %v661, %v399
    %v694 = vadd.f32 %v662, %v404
    %v695 = vadd.f32 %v663, %v407
    %v696 = vadd.f32 %v664, %v412
    %v697 = vadd.f32 %v665, %v415
    %v698 = vadd.f32 %v666, %v420
    %v699 = vadd.f32 %v667, %v423
    %v700 = vadd.f32 %v668, %v428
    %v701 = vadd.f32 %v669, %v431
    %v702 = vadd.f32 %v670, %v436
    %v703 = vadd.f32 %v671, %v439
    %v704 = vadd.f32 %v672, %v444
    %v705 = vadd.f32 %v673, %v447
    %v706 = vadd.f32 %v674, %v452
    %v707 = vadd.f32 %v675, %v455
    %v708 = vadd.f32 %v676, %v460
    %v709 = vadd.f32 %v677, %v463
    %vm710 = vcmp.gt.f32.partialorder %v678, 0.0
    %vm711 = vcmp.gt.f32.partialorder %v679, 0.0
    %vm712 = vcmp.gt.f32.partialorder %v680, 0.0
    %vm713 = vcmp.gt.f32.partialorder %v681, 0.0
    %vm714 = vcmp.gt.f32.partialorder %v682, 0.0
    %vm715 = vcmp.gt.f32.partialorder %v683, 0.0
    %vm716 = vcmp.gt.f32.partialorder %v684, 0.0
    %vm717 = vcmp.gt.f32.partialorder %v685, 0.0
    %vm718 = vcmp.gt.f32.partialorder %v686, 0.0
    %vm719 = vcmp.gt.f32.partialorder %v687, 0.0
    %vm720 = vcmp.gt.f32.partialorder %v688, 0.0
    %vm721 = vcmp.gt.f32.partialorder %v689, 0.0
    %vm722 = vcmp.gt.f32.partialorder %v690, 0.0
    %vm723 = vcmp.gt.f32.partialorder %v691, 0.0
    %vm724 = vcmp.gt.f32.partialorder %v692, 0.0
    %vm725 = vcmp.gt.f32.partialorder %v693, 0.0
    %vm726 = vcmp.gt.f32.partialorder %v694, 0.0
    %vm727 = vcmp.gt.f32.partialorder %v695, 0.0
    %vm728 = vcmp.gt.f32.partialorder %v696, 0.0
    %vm729 = vcmp.gt.f32.partialorder %v697, 0.0
    %vm730 = vcmp.gt.f32.partialorder %v698, 0.0
    %vm731 = vcmp.gt.f32.partialorder %v699, 0.0
    %vm732 = vcmp.gt.f32.partialorder %v700, 0.0
    %vm733 = vcmp.gt.f32.partialorder %v701, 0.0
    %vm734 = vcmp.gt.f32.partialorder %v702, 0.0
    %vm735 = vcmp.gt.f32.partialorder %v703, 0.0
    %vm736 = vcmp.gt.f32.partialorder %v704, 0.0
    %vm737 = vcmp.gt.f32.partialorder %v705, 0.0
    %vm738 = vcmp.gt.f32.partialorder %v706, 0.0
    %vm739 = vcmp.gt.f32.partialorder %v707, 0.0
    %vm740 = vcmp.gt.f32.partialorder %v708, 0.0
    %vm741 = vcmp.gt.f32.partialorder %v709, 0.0
    %v742 = vmul.f32 %v678, 0.2
    %v743 = vmul.f32 %v679, 0.2
    %v744 = vmul.f32 %v680, 0.2
    %v745 = vmul.f32 %v681, 0.2
    %v746 = vmul.f32 %v682, 0.2
    %v747 = vmul.f32 %v683, 0.2
    %v748 = vmul.f32 %v684, 0.2
    %v749 = vmul.f32 %v685, 0.2
    %v750 = vmul.f32 %v686, 0.2
    %v751 = vmul.f32 %v687, 0.2
    %v752 = vmul.f32 %v688, 0.2
    %v753 = vmul.f32 %v689, 0.2
    %v754 = vmul.f32 %v690, 0.2
    %v755 = vmul.f32 %v691, 0.2
    %v756 = vmul.f32 %v692, 0.2
    %v757 = vmul.f32 %v693, 0.2
    %v758 = vmul.f32 %v694, 0.2
    %v759 = vmul.f32 %v695, 0.2
    %v760 = vmul.f32 %v696, 0.2
    %v761 = vmul.f32 %v697, 0.2
    %v762 = vmul.f32 %v698, 0.2
    %v763 = vmul.f32 %v699, 0.2
    %v764 = vmul.f32 %v700, 0.2
    %v765 = vmul.f32 %v701, 0.2
    %v766 = vmul.f32 %v702, 0.2
    %v767 = vmul.f32 %v703, 0.2
    %v768 = vmul.f32 %v704, 0.2
    %v769 = vmul.f32 %v705, 0.2
    %v770 = vmul.f32 %v706, 0.2
    %v771 = vmul.f32 %v707, 0.2
    %v772 = vmul.f32 %v708, 0.2
    %v773 = vmul.f32 %v709, 0.2
    %v774 = vsel %vm710, %v678, %v742
    %v775 = vsel %vm711, %v679, %v743
    %v776 = vsel %vm712, %v680, %v744
    %v777 = vsel %vm713, %v681, %v745
    %v778 = vsel %vm714, %v682, %v746
    %v779 = vsel %vm715, %v683, %v747
    %v780 = vsel %vm716, %v684, %v748
    %v781 = vsel %vm717, %v685, %v749
    %v782 = vsel %vm718, %v686, %v750
    %v783 = vsel %vm719, %v687, %v751
    %v784 = vsel %vm720, %v688, %v752
    %v785 = vsel %vm721, %v689, %v753
    %v786 = vsel %vm722, %v690, %v754
    %v787 = vsel %vm723, %v691, %v755
    %v788 = vsel %vm724, %v692, %v756
    %v789 = vsel %vm725, %v693, %v757
    %v790 = vsel %vm726, %v694, %v758
    %v791 = vsel %vm727, %v695, %v759
    %v792 = vsel %vm728, %v696, %v760
    %v793 = vsel %vm729, %v697, %v761
    %v794 = vsel %vm730, %v698, %v762
    %v795 = vsel %vm731, %v699, %v763
    %v796 = vsel %vm732, %v700, %v764
    %v797 = vsel %vm733, %v701, %v765
    %v798 = vsel %vm734, %v702, %v766
    %v799 = vsel %vm735, %v703, %v767
    %v800 = vsel %vm736, %v704, %v768
    %v801 = vsel %vm737, %v705, %v769
    %v802 = vsel %vm738, %v706, %v770
    %v803 = vsel %vm739, %v707, %v771
    %v804 = vsel %vm740, %v708, %v772
    %v805 = vsel %vm741, %v709, %v773
    %v806 = vld [vmem:[%s9] sm:$0x1]
    %v808 = vlaneseq
    %v809 = vshrl.u32 %v808, 7
    %v810 = vsub.s32 0, %v809
    %v811 = vrot.slane %v806, %v810
    %v813 = vmul.f32 %v774, %v811
    %v814 = vmul.f32 %v775, %v811
    %v815 = vmul.f32 %v776, %v811
    %v816 = vmul.f32 %v777, %v811
    %v817 = vmul.f32 %v778, %v811
    %v818 = vmul.f32 %v779, %v811
    %v819 = vmul.f32 %v780, %v811
    %v820 = vmul.f32 %v781, %v811
    %v821 = vmul.f32 %v782, %v811
    %v822 = vmul.f32 %v783, %v811
    %v823 = vmul.f32 %v784, %v811
    %v824 = vmul.f32 %v785, %v811
    %v825 = vmul.f32 %v786, %v811
    %v826 = vmul.f32 %v787, %v811
    %v827 = vmul.f32 %v788, %v811
    %v828 = vmul.f32 %v789, %v811
    %v829 = vmul.f32 %v790, %v811
    %v830 = vmul.f32 %v791, %v811
    %v831 = vmul.f32 %v792, %v811
    %v832 = vmul.f32 %v793, %v811
    %v833 = vmul.f32 %v794, %v811
    %v834 = vmul.f32 %v795, %v811
    %v835 = vmul.f32 %v796, %v811
    %v836 = vmul.f32 %v797, %v811
    %v837 = vmul.f32 %v798, %v811
    %v838 = vmul.f32 %v799, %v811
    %v839 = vmul.f32 %v800, %v811
    %v840 = vmul.f32 %v801, %v811
    %v841 = vmul.f32 %v802, %v811
    %v842 = vmul.f32 %v803, %v811
    %v843 = vmul.f32 %v804, %v811
    %v844 = vmul.f32 %v805, %v811
    %845 = vadd.xlane.f32.xlu0 %v813
    %v846 = vpop.xlane.xlu0 %845
    %847 = vadd.xlane.f32.xlu0 %v814
    %v848 = vpop.xlane.xlu0 %847
    %849 = vadd.xlane.f32.xlu0 %v815
    %v850 = vpop.xlane.xlu0 %849
    %851 = vadd.xlane.f32.xlu0 %v816
    %v852 = vpop.xlane.xlu0 %851
    %853 = vadd.xlane.f32.xlu0 %v817
    %v854 = vpop.xlane.xlu0 %853
    %855 = vadd.xlane.f32.xlu0 %v818
    %v856 = vpop.xlane.xlu0 %855
    %857 = vadd.xlane.f32.xlu0 %v819
    %v858 = vpop.xlane.xlu0 %857
    %859 = vadd.xlane.f32.xlu0 %v820
    %v860 = vpop.xlane.xlu0 %859
    %861 = vadd.xlane.f32.xlu0 %v821
    %v862 = vpop.xlane.xlu0 %861
    %863 = vadd.xlane.f32.xlu0 %v822
    %v864 = vpop.xlane.xlu0 %863
    %865 = vadd.xlane.f32.xlu0 %v823
    %v866 = vpop.xlane.xlu0 %865
    %867 = vadd.xlane.f32.xlu0 %v824
    %v868 = vpop.xlane.xlu0 %867
    %869 = vadd.xlane.f32.xlu0 %v825
    %v870 = vpop.xlane.xlu0 %869
    %871 = vadd.xlane.f32.xlu0 %v826
    %v872 = vpop.xlane.xlu0 %871
    %873 = vadd.xlane.f32.xlu0 %v827
    %v874 = vpop.xlane.xlu0 %873
    %875 = vadd.xlane.f32.xlu0 %v828
    %v876 = vpop.xlane.xlu0 %875
    %877 = vadd.xlane.f32.xlu0 %v829
    %v878 = vpop.xlane.xlu0 %877
    %879 = vadd.xlane.f32.xlu0 %v830
    %v880 = vpop.xlane.xlu0 %879
    %881 = vadd.xlane.f32.xlu0 %v831
    %v882 = vpop.xlane.xlu0 %881
    %883 = vadd.xlane.f32.xlu0 %v832
    %v884 = vpop.xlane.xlu0 %883
    %885 = vadd.xlane.f32.xlu0 %v833
    %v886 = vpop.xlane.xlu0 %885
    %887 = vadd.xlane.f32.xlu0 %v834
    %v888 = vpop.xlane.xlu0 %887
    %889 = vadd.xlane.f32.xlu0 %v835
    %v890 = vpop.xlane.xlu0 %889
    %891 = vadd.xlane.f32.xlu0 %v836
    %v892 = vpop.xlane.xlu0 %891
    %893 = vadd.xlane.f32.xlu0 %v837
    %v894 = vpop.xlane.xlu0 %893
    %895 = vadd.xlane.f32.xlu0 %v838
    %v896 = vpop.xlane.xlu0 %895
    %897 = vadd.xlane.f32.xlu0 %v839
    %v898 = vpop.xlane.xlu0 %897
    %899 = vadd.xlane.f32.xlu0 %v840
    %v900 = vpop.xlane.xlu0 %899
    %901 = vadd.xlane.f32.xlu0 %v841
    %v902 = vpop.xlane.xlu0 %901
    %903 = vadd.xlane.f32.xlu0 %v842
    %v904 = vpop.xlane.xlu0 %903
    %905 = vadd.xlane.f32.xlu0 %v843
    %v906 = vpop.xlane.xlu0 %905
    %907 = vadd.xlane.f32.xlu0 %v844
    %v908 = vpop.xlane.xlu0 %907
    %v909 = vld [vmem:[%s3] sm:$0xff]
    %v910 = vld [vmem:[%s3 + $0x8] sm:$0xff]
    %vm911 = vcmp.gt.f32.partialorder %v909, 0.0
    %vm912 = vcmp.gt.f32.partialorder %v910, 0.0
    %v945 = vlaneseq
    %v946 = vand.u32 %v945, 127
    %v947 = vlaneseq
    %v948 = vshrl.u32 %v947, 7
    %v949 = vsub.s32 %v946, %v948
    %v950 = vrot.slane %v846, %v949
    %v951 = vadd.s32 %v946, 4294967288
    %v952 = vlaneseq
    %v953 = vshrl.u32 %v952, 7
    %v954 = vsub.s32 %v951, %v953
    %v955 = vrot.slane %v848, %v954
    %vm956 = vcmask 130112
    %v957 = vsel %vm956, %v955, %v950
    %v958 = vlaneseq
    %v959 = vshrl.u32 %v958, 7
    %v960 = vsub.s32 %v946, %v959
    %v961 = vrot.slane %v850, %v960
    %v962 = vlaneseq
    %v963 = vshrl.u32 %v962, 7
    %v964 = vsub.s32 %v951, %v963
    %v965 = vrot.slane %v852, %v964
    %v966 = vsel %vm956, %v965, %v961
    %v967 = vlaneseq
    %v968 = vshrl.u32 %v967, 7
    %v969 = vsub.s32 %v946, %v968
    %v970 = vrot.slane %v854, %v969
    %v971 = vlaneseq
    %v972 = vshrl.u32 %v971, 7
    %v973 = vsub.s32 %v951, %v972
    %v974 = vrot.slane %v856, %v973
    %v975 = vsel %vm956, %v974, %v970
    %v976 = vlaneseq
    %v977 = vshrl.u32 %v976, 7
    %v978 = vsub.s32 %v946, %v977
    %v979 = vrot.slane %v858, %v978
    %v980 = vlaneseq
    %v981 = vshrl.u32 %v980, 7
    %v982 = vsub.s32 %v951, %v981
    %v983 = vrot.slane %v860, %v982
    %v984 = vsel %vm956, %v983, %v979
    %v985 = vlaneseq
    %v986 = vshrl.u32 %v985, 7
    %v987 = vsub.s32 %v946, %v986
    %v988 = vrot.slane %v862, %v987
    %v989 = vlaneseq
    %v990 = vshrl.u32 %v989, 7
    %v991 = vsub.s32 %v951, %v990
    %v992 = vrot.slane %v864, %v991
    %v993 = vsel %vm956, %v992, %v988
    %v994 = vlaneseq
    %v995 = vshrl.u32 %v994, 7
    %v996 = vsub.s32 %v946, %v995
    %v997 = vrot.slane %v866, %v996
    %v998 = vlaneseq
    %v999 = vshrl.u32 %v998, 7
    %v1000 = vsub.s32 %v951, %v999
    %v1001 = vrot.slane %v868, %v1000
    %v1002 = vsel %vm956, %v1001, %v997
    %v1003 = vlaneseq
    %v1004 = vshrl.u32 %v1003, 7
    %v1005 = vsub.s32 %v946, %v1004
    %v1006 = vrot.slane %v870, %v1005
    %v1007 = vlaneseq
    %v1008 = vshrl.u32 %v1007, 7
    %v1009 = vsub.s32 %v951, %v1008
    %v1010 = vrot.slane %v872, %v1009
    %v1011 = vsel %vm956, %v1010, %v1006
    %v1012 = vlaneseq
    %v1013 = vshrl.u32 %v1012, 7
    %v1014 = vsub.s32 %v946, %v1013
    %v1015 = vrot.slane %v874, %v1014
    %v1016 = vlaneseq
    %v1017 = vshrl.u32 %v1016, 7
    %v1018 = vsub.s32 %v951, %v1017
    %v1019 = vrot.slane %v876, %v1018
    %v1020 = vsel %vm956, %v1019, %v1015
    %v1021 = vlaneseq
    %v1022 = vshrl.u32 %v1021, 7
    %v1023 = vsub.s32 %v946, %v1022
    %v1024 = vrot.slane %v878, %v1023
    %v1025 = vlaneseq
    %v1026 = vshrl.u32 %v1025, 7
    %v1027 = vsub.s32 %v951, %v1026
    %v1028 = vrot.slane %v880, %v1027
    %v1029 = vsel %vm956, %v1028, %v1024
    %v1030 = vlaneseq
    %v1031 = vshrl.u32 %v1030, 7
    %v1032 = vsub.s32 %v946, %v1031
    %v1033 = vrot.slane %v882, %v1032
    %v1034 = vlaneseq
    %v1035 = vshrl.u32 %v1034, 7
    %v1036 = vsub.s32 %v951, %v1035
    %v1037 = vrot.slane %v884, %v1036
    %v1038 = vsel %vm956, %v1037, %v1033
    %v1039 = vlaneseq
    %v1040 = vshrl.u32 %v1039, 7
    %v1041 = vsub.s32 %v946, %v1040
    %v1042 = vrot.slane %v886, %v1041
    %v1043 = vlaneseq
    %v1044 = vshrl.u32 %v1043, 7
    %v1045 = vsub.s32 %v951, %v1044
    %v1046 = vrot.slane %v888, %v1045
    %v1047 = vsel %vm956, %v1046, %v1042
    %v1048 = vlaneseq
    %v1049 = vshrl.u32 %v1048, 7
    %v1050 = vsub.s32 %v946, %v1049
    %v1051 = vrot.slane %v890, %v1050
    %v1052 = vlaneseq
    %v1053 = vshrl.u32 %v1052, 7
    %v1054 = vsub.s32 %v951, %v1053
    %v1055 = vrot.slane %v892, %v1054
    %v1056 = vsel %vm956, %v1055, %v1051
    %v1057 = vlaneseq
    %v1058 = vshrl.u32 %v1057, 7
    %v1059 = vsub.s32 %v946, %v1058
    %v1060 = vrot.slane %v894, %v1059
    %v1061 = vlaneseq
    %v1062 = vshrl.u32 %v1061, 7
    %v1063 = vsub.s32 %v951, %v1062
    %v1064 = vrot.slane %v896, %v1063
    %v1065 = vsel %vm956, %v1064, %v1060
    %v1066 = vlaneseq
    %v1067 = vshrl.u32 %v1066, 7
    %v1068 = vsub.s32 %v946, %v1067
    %v1069 = vrot.slane %v898, %v1068
    %v1070 = vlaneseq
    %v1071 = vshrl.u32 %v1070, 7
    %v1072 = vsub.s32 %v951, %v1071
    %v1073 = vrot.slane %v900, %v1072
    %v1074 = vsel %vm956, %v1073, %v1069
    %v1075 = vlaneseq
    %v1076 = vshrl.u32 %v1075, 7
    %v1077 = vsub.s32 %v946, %v1076
    %v1078 = vrot.slane %v902, %v1077
    %v1079 = vlaneseq
    %v1080 = vshrl.u32 %v1079, 7
    %v1081 = vsub.s32 %v951, %v1080
    %v1082 = vrot.slane %v904, %v1081
    %v1083 = vsel %vm956, %v1082, %v1078
    %v1084 = vlaneseq
    %v1085 = vshrl.u32 %v1084, 7
    %v1086 = vsub.s32 %v946, %v1085
    %v1087 = vrot.slane %v906, %v1086
    %v1088 = vlaneseq
    %v1089 = vshrl.u32 %v1088, 7
    %v1090 = vsub.s32 %v951, %v1089
    %v1091 = vrot.slane %v908, %v1090
    %v1092 = vsel %vm956, %v1091, %v1087
    %vm1093 = vcmask 1041409
    %v1094 = vsel %vm1093, %v966, %v957
    %vm1095 = vcmask 1042434
    %v1096 = vsel %vm1095, %v975, %v1094
    %vm1097 = vcmask 1043459
    %v1098 = vsel %vm1097, %v984, %v1096
    %vm1099 = vcmask 1044484
    %v1100 = vsel %vm1099, %v993, %v1098
    %vm1101 = vcmask 1045509
    %v1102 = vsel %vm1101, %v1002, %v1100
    %vm1103 = vcmask 1046534
    %v1104 = vsel %vm1103, %v1011, %v1102
    %vm1105 = vcmask 1047559
    %v1106 = vsel %vm1105, %v1020, %v1104
    %v1107 = vsel %vm1093, %v1038, %v1029
    %v1108 = vsel %vm1095, %v1047, %v1107
    %v1109 = vsel %vm1097, %v1056, %v1108
    %v1110 = vsel %vm1099, %v1065, %v1109
    %v1111 = vsel %vm1101, %v1074, %v1110
    %v1112 = vsel %vm1103, %v1083, %v1111
    %v1113 = vsel %vm1105, %v1092, %v1112
    %v1116 = vsel %vm911, %v1106, -1e+30
    %v1117 = vsel %vm912, %v1113, -1e+30
    %vm1118 = vcmask 130048
    %v1119 = vsel %vm1118, %v1116, -inf
    %1120 = vmax.xlane.f32.xlu0 %v1119
    %v1121 = vpop.xlane.xlu0 %1120
    %v1122 = vsel %vm1118, %v1117, -inf
    %1123 = vmax.xlane.f32.xlu0 %v1122
    %v1124 = vpop.xlane.xlu0 %1123
    %v1125 = vsub.f32 %v1116, %v1121
    %v1126 = vsub.f32 %v1117, %v1124
    %v1127 = vmul.f32 %v1125, 1.442695
    %v1128 = vpow.pop %v1127
    %v1129 = vmul.f32 %v1126, 1.442695
    %v1130 = vpow.pop %v1129
    %v1131 = vmul.f32 %v1128, %v909
    %v1132 = vmul.f32 %v1130, %v910
    %v1133 = vsel %vm1118, %v1131, 0.0
    %1134 = vadd.xlane.f32.xlu0 %v1133
    %v1135 = vpop.xlane.xlu0 %1134
    %v1136 = vsel %vm1118, %v1132, 0.0
    %1137 = vadd.xlane.f32.xlu0 %v1136
    %v1138 = vpop.xlane.xlu0 %1137
    %v1139 = vmax.f32 %v1135, 1e-16
    %v1140 = vmax.f32 %v1138, 1e-16
    %v1141 = vrcp.pop %v1139
    %v1142 = vrcp.pop %v1140
    %v1143 = vmul.f32 %v1131, %v1141
    %v1144 = vmul.f32 %v1132, %v1142
    %v1145 = vpack.c.bf16 %v1144, %v1143
    %v1146 = vpack.c.bf16 %v124, %v121
    %v1147 = vld [vmem:[%s10] sm:$0x1]
    %v1149 = vlaneseq
    %v1150 = vshrl.u32 %v1149, 7
    %v1151 = vsub.s32 0, %v1150
    %v1152 = vrot.slane %v1147, %v1151
    %v1155 = vsel %vm1118, %v1145, 0
    %1157 = vmatprep.subr.bf16.mxu0 0
    %1158 = vmatpush1.bf16.msra.mxu0 %v1146
    %1159 = vmatprep.subr.bf16.mxu0 0
    %1160 = vmatpush1.bf16.msra.mxu0 0
    %1161 = vmatprep.subr.bf16.mxu0 0
    %1162 = vmatpush1.bf16.msra.mxu0 0
    %1163 = vmatprep.subr.bf16.mxu0 0
    %1164 = vmatpush1.bf16.msra.mxu0 0
    %1165 = vmatprep.subr.bf16.mxu0 0
    %1166 = vmatpush1.bf16.msra.mxu0 0
    %1167 = vmatprep.subr.bf16.mxu0 0
    %1168 = vmatpush1.bf16.msra.mxu0 0
    %1169 = vmatprep.subr.bf16.mxu0 0
    %1170 = vmatpush1.bf16.msra.mxu0 0
    %1171 = vmatprep.subr.bf16.mxu0 0
    %1172 = vmatpush1.bf16.msra.mxu0 0
    %1173 = vmatprep.subr.bf16.mxu0 0
    %1174 = vmatpush1.bf16.msra.mxu0 0
    %1175 = vmatprep.subr.bf16.mxu0 0
    %1176 = vmatpush1.bf16.msra.mxu0 0
    %1177 = vmatprep.subr.bf16.mxu0 0
    %1178 = vmatpush1.bf16.msra.mxu0 0
    %1179 = vmatprep.subr.bf16.mxu0 0
    %1180 = vmatpush1.bf16.msra.mxu0 0
    %1181 = vmatprep.subr.bf16.mxu0 0
    %1182 = vmatpush1.bf16.msra.mxu0 0
    %1183 = vmatprep.subr.bf16.mxu0 0
    %1184 = vmatpush1.bf16.msra.mxu0 0
    %1185 = vmatprep.subr.bf16.mxu0 0
    %1186 = vmatpush1.bf16.msra.mxu0 0
    %1187 = vmatprep.subr.bf16.mxu0 0
    %1188 = vmatpush1.bf16.msra.mxu0 0
    %1189 = vmatprep.mubr.bf16.mxu0 0
    %1190 = vmatmul.mubr.bf16.gmra.mrb[0].mxu0 %v1155
    %v1191 = vpop.f32.mrb[0].mxu0
    %v1192 = vadd.f32 %v1152, %v1191
    %v1193 = vpop.f32.mrb[0].mxu0
    %v1194 = vpop.f32.mrb[0].mxu0
    %v1195 = vadd.f32 %v1152, %v1194
    %v1196 = vpop.f32.mrb[0].mxu0
    %1197 = vdwg.mxu0
    %v1198 = vmax.f32 %v1192, 0.0
    %v1199 = vmax.f32 %v1195, 0.0
    %v1200 = vld [vmem:[%s13] sm:$0x1]
    %v1202 = vlaneseq
    %v1203 = vshrl.u32 %v1202, 7
    %v1204 = vsub.s32 0, %v1203
    %v1205 = vrot.slane %v1200, %v1204
    %v1207 = vsub.f32 %v1198, %v1205
    %v1208 = vsub.f32 %v1199, %v1205
    %v1209 = vld [vmem:[%s14] sm:$0x1]
    %v1210 = vadd.f32 %v1209, 1e-05
    %v1211 = vrsqrt.pop %v1210
    %v1213 = vlaneseq
    %v1214 = vshrl.u32 %v1213, 7
    %v1215 = vsub.s32 0, %v1214
    %v1216 = vrot.slane %v1211, %v1215
    %v1218 = vmul.f32 %v1207, %v1216
    %v1219 = vmul.f32 %v1208, %v1216
    %v1220 = vld [vmem:[%s11] sm:$0x1]
    %v1222 = vlaneseq
    %v1223 = vshrl.u32 %v1222, 7
    %v1224 = vsub.s32 0, %v1223
    %v1225 = vrot.slane %v1220, %v1224
    %v1227 = vmul.f32 %v1218, %v1225
    %v1228 = vmul.f32 %v1219, %v1225
    %v1229 = vld [vmem:[%s12] sm:$0x1]
    %v1231 = vlaneseq
    %v1232 = vshrl.u32 %v1231, 7
    %v1233 = vsub.s32 0, %v1232
    %v1234 = vrot.slane %v1229, %v1233
    %v1236 = vadd.f32 %v1227, %v1234
    %v1237 = vadd.f32 %v1228, %v1234
    %1238 = vst [vmem:[#allocation2] sm:$0xff] %v1236
    %1239 = vst [vmem:[#allocation2 + $0x8] sm:$0xff] %v1237
    // Predicated region
    $region62: #{tpu_custom_call.1} parent=1 // pred_check
      _
    $region63: #{tpu_custom_call.1} parent=1 // pred_check_branch
      %1241 = sbr.rel (0) target = $region65
    $region64: #{tpu_custom_call.1} parent=1 // pred_region
      %s1243 = ssub.s32 256, 256
      %1244 = vsyncadd [#allocation3], %s1243
      %s1245 = sshll.u32 [#allocation2], 4
      %s1246 = int_to_ptr.vmem [resolvable:$true] %s1245
      %1251 = dma.vmem_to_hbm [thread:$0]  %s1246, 256, %s15, [#allocation3], 128, 128, 8
    $region65: #{tpu_custom_call.1} parent=1 // pred_fallthru
      _
    // Predicated region
    $region66: #{tpu_custom_call.1} parent=1 // pred_check
      _
    $region67: #{tpu_custom_call.1} parent=1 // pred_check_branch
      %1253 = sbr.rel (0) target = $region69
    $region68: #{tpu_custom_call.1} parent=1 // pred_region
      %1254 = dma.done [#allocation3], 256
    $region69: #{tpu_custom_call.1} parent=1 // pred_fallthru
      _
    %1255 = vsyncpa [#allocation3], 1

</llo_original>
